<compile_context>
chip_gen: v7x
topology: tpu7x:2x2x1
jax: 0.10.0
libtpu: 0.0.40
codegen_flags: <defaults>
</compile_context>

<pallas_src>
import functools

import jax
import jax.numpy as jnp
import numpy as np
from jax.experimental import pallas as pl
from jax.experimental.pallas import tpu as pltpu


def _round_up(x, m):
    return (x + m - 1) // m * m


# -----------------------------------------------------------------------------
# Fused Pallas kernel: all LSTM layers (wavefront) + Linear + LogSoftmax
# -----------------------------------------------------------------------------
def _make_fused_rnn_kernel(num_layers, seq_len, hidden_size, batch_pad):
    L, T, H, B = num_layers, seq_len, hidden_size, batch_pad

    def sigmoid_fast(x):
        # sigmoid(x) == 0.5 * tanh(0.5 * x) + 0.5  (one EUP op, no divide).
        return 0.5 * jnp.tanh(0.5 * x) + 0.5

    def lstm_cell(gates, c_prev):
        # Gate columns are pre-permuted to [ i | f | o | g ].
        sig = sigmoid_fast(gates[:, : 3 * H])          # one contiguous slice
        g_g = jnp.tanh(gates[:, 3 * H:])
        i_g = sig[:, :H]
        f_g = sig[:, H: 2 * H]
        o_g = sig[:, 2 * H: 3 * H]
        c_new = f_g * c_prev + i_g * g_g
        h_new = o_g * jnp.tanh(c_new)
        return h_new, c_new

    def kernel(*refs):
        # refs layout:
        #   [0]                x_flat   (T*B, D_in)   bf16
        #   [1+3l .. 3+3l]     w_ih_l (D_in,4H) bf16, w_hh_l (H,4H) bf16,
        #                      bias_l (1,4H) f32                    per layer l
        #   [1+3L] / [2+3L]    fc_w (H, O_pad) bf16 / fc_b (1, O_pad) f32
        #   [3+3L]             out_ref  (B, O_pad)    f32
        x_ref = refs[0]
        fcw_ref = refs[1 + 3 * L]
        fcb_ref = refs[2 + 3 * L]
        out_ref = refs[3 + 3 * L]

        wih = [refs[1 + 3 * l][...] for l in range(L)]
        whh = [refs[2 + 3 * l][...] for l in range(L)]
        bias = [refs[3 + 3 * l][...] for l in range(L)]

        # Hoisted layer-0 input projection for ALL timesteps: one big MXU
        # matmul, bias folded in once, outside the recurrence.
        xproj0 = jnp.dot(x_ref[...], wih[0],
                         preferred_element_type=jnp.float32) + bias[0]  # (T*B,4H)

        h = [jnp.zeros((B, H), jnp.float32) for _ in range(L)]
        c = [jnp.zeros((B, H), jnp.float32) for _ in range(L)]
        out_bf = [None] * L   # most recent h_l[t] (bf16), feeds layer l+1 / FC

        # Wavefront over (layer, timestep) diagonals.  T is small & static
        # here; for realistic T switch the diagonal loop to lax.fori_loop with
        # bounded unroll and VMEM-staged per-layer state.
        for d in range(T + L - 1):
            produced = []
            for l in range(L):
                t = d - l
                if not (0 <= t < T):
                    continue
                if l == 0:
                    g_in = xproj0[t * B:(t + 1) * B, :]   # static, 8-aligned rows
                else:
                    g_in = jnp.dot(out_bf[l - 1], wih[l],
                                   preferred_element_type=jnp.float32) + bias[l]
                gates = g_in + jnp.dot(h[l].astype(jnp.bfloat16), whh[l],
                                       preferred_element_type=jnp.float32)
                h_new, c_new = lstm_cell(gates, c[l])
                produced.append((l, h_new, c_new))
            # Commit after the whole diagonal so every cell on it read the
            # previous diagonal's state (keeps cells mutually independent).
            for l, h_new, c_new in produced:
                h[l], c[l] = h_new, c_new
                out_bf[l] = h_new.astype(jnp.bfloat16)

        # Epilogue: Linear + LogSoftmax on the last layer's final hidden state.
        # O is lane-padded to 128; padded bias columns are -1e30 so they never
        # win the max and contribute exp(.) == 0 to the sum.
        logits = (jnp.dot(out_bf[L - 1], fcw_ref[...],
                          preferred_element_type=jnp.float32) + fcb_ref[...])
        m = jnp.max(logits, axis=-1, keepdims=True)
        z = logits - m
        lse = jnp.log(jnp.sum(jnp.exp(z), axis=-1, keepdims=True))
        out_ref[...] = z - lse

    return kernel


# -----------------------------------------------------------------------------
# Wrapper
# -----------------------------------------------------------------------------
@functools.partial(jax.jit, static_argnames=("num_layers",))
def rnn_forward(x, params, num_layers):
    """Forward pass: x (seq_len, batch, input_size) -> (batch, output) log-probs."""
    T, B, D = x.shape
    H = params["lstm"][0][1].shape[0]
    O = params["fc_w"].shape[1]

    B_pad = _round_up(max(B, 8), 8)        # sublane-align the batch
    O_pad = _round_up(max(O, 128), 128)    # lane-dense logits / output store

    # Gate-column permutation [i, f, g, o] -> [i, f, o, g].
    perm = np.concatenate([np.arange(H), np.arange(H) + H,
                           np.arange(H) + 3 * H, np.arange(H) + 2 * H])

    # Pad batch with zero rows and flatten (T, B_pad, D) -> (T*B_pad, D) here,
    # so the kernel never reshapes.
    x_pad = jnp.zeros((T, B_pad, D), x.dtype).at[:, :B, :].set(x)
    x_flat = x_pad.reshape(T * B_pad, D).astype(jnp.bfloat16)

    inputs = [x_flat]
    in_specs = [pl.BlockSpec(x_flat.shape, lambda: (0, 0))]

    for l in range(num_layers):
        w_ih, w_hh, b = params["lstm"][l]
        w_ih = w_ih[:, perm].astype(jnp.bfloat16)
        w_hh = w_hh[:, perm].astype(jnp.bfloat16)
        b = b[:, perm]
        inputs += [w_ih, w_hh, b]
        in_specs += [pl.BlockSpec(w_ih.shape, lambda: (0, 0)),
                     pl.BlockSpec(w_hh.shape, lambda: (0, 0)),
                     pl.BlockSpec(b.shape, lambda: (0, 0))]

    fc_w = jnp.zeros((H, O_pad), jnp.bfloat16).at[:, :O].set(
        params["fc_w"].astype(jnp.bfloat16))
    fc_b = jnp.full((1, O_pad), -1e30, jnp.float32).at[:, :O].set(params["fc_b"])
    inputs += [fc_w, fc_b]
    in_specs += [pl.BlockSpec(fc_w.shape, lambda: (0, 0)),
                 pl.BlockSpec(fc_b.shape, lambda: (0, 0))]

    kernel = _make_fused_rnn_kernel(num_layers, T, H, B_pad)
    out_pad = pl.pallas_call(
        kernel,
        out_shape=jax.ShapeDtypeStruct((B_pad, O_pad), jnp.float32),
        in_specs=in_specs,
        out_specs=pl.BlockSpec((B_pad, O_pad), lambda: (0, 0)),
        compiler_params=pltpu.CompilerParams(
            # Toy shapes need only KiBs; keep an explicit scoped-VMEM budget so
            # the same kernel scales past the 16/32 MiB defaults on v5e/v6e and
            # stays within v7x's 64 MiB physical VMEM.
            vmem_limit_bytes=32 * 1024 * 1024),
    )(*inputs)
    # TODO(synk): for real (>=16-row) batches on v7x, add a ('parallel',)
    # batch-block grid axis so both TensorCores each process half the batch.
    return out_pad[:B, :O]


# -----------------------------------------------------------------------------
# Pure-JAX reference (PyTorch gate order, same bf16 matmul dtypes)
# -----------------------------------------------------------------------------
def rnn_reference(x, params, num_layers):
    seq = x.astype(jnp.bfloat16)
    h = None
    for l in range(num_layers):
        w_ih, w_hh, b = params["lstm"][l]
        w_ih = w_ih.astype(jnp.bfloat16)
        w_hh = w_hh.astype(jnp.bfloat16)
        T, B, _ = seq.shape
        H = w_hh.shape[0]
        h = jnp.zeros((B, H), jnp.float32)
        c = jnp.zeros((B, H), jnp.float32)
        outs = []
        for t in range(T):
            gates = (jnp.dot(seq[t], w_ih, preferred_element_type=jnp.float32)
                     + jnp.dot(h.astype(jnp.bfloat16), w_hh,
                               preferred_element_type=jnp.float32) + b)
            i_g = jax.nn.sigmoid(gates[:, :H])
            f_g = jax.nn.sigmoid(gates[:, H:2 * H])
            g_g = jnp.tanh(gates[:, 2 * H:3 * H])
            o_g = jax.nn.sigmoid(gates[:, 3 * H:])
            c = f_g * c + i_g * g_g
            h = o_g * jnp.tanh(c)
            outs.append(h.astype(jnp.bfloat16))
        seq = jnp.stack(outs)
    logits = (jnp.dot(h.astype(jnp.bfloat16),
                      params["fc_w"].astype(jnp.bfloat16),
                      preferred_element_type=jnp.float32) + params["fc_b"])
    return jax.nn.log_softmax(logits, axis=-1)


# -----------------------------------------------------------------------------
# Deterministic parameter init (PyTorch-style uniform(-1/sqrt(H), 1/sqrt(H)))
# -----------------------------------------------------------------------------
def init_params(key, input_size, hidden_size, num_layers, output_size):
    k_lstm = 1.0 / jnp.sqrt(hidden_size)
    params = {"lstm": []}
    for l in range(num_layers):
        d_in = input_size if l == 0 else hidden_size
        key, k1, k2, k3, k4 = jax.random.split(key, 5)
        w_ih = jax.random.uniform(k1, (d_in, 4 * hidden_size),
                                  jnp.float32, -k_lstm, k_lstm)
        w_hh = jax.random.uniform(k2, (hidden_size, 4 * hidden_size),
                                  jnp.float32, -k_lstm, k_lstm)
        b_ih = jax.random.uniform(k3, (4 * hidden_size,),
                                  jnp.float32, -k_lstm, k_lstm)
        b_hh = jax.random.uniform(k4, (4 * hidden_size,),
                                  jnp.float32, -k_lstm, k_lstm)
        params["lstm"].append((w_ih, w_hh, (b_ih + b_hh).reshape(1, -1)))
    k_fc = 1.0 / jnp.sqrt(hidden_size)
    key, k1, k2 = jax.random.split(key, 3)
    params["fc_w"] = jax.random.uniform(k1, (hidden_size, output_size),
                                        jnp.float32, -k_fc, k_fc)
    params["fc_b"] = jax.random.uniform(k2, (1, output_size),
                                        jnp.float32, -k_fc, k_fc)
    return params


# -----------------------------------------------------------------------------
if __name__ == "__main__":
    input_size = 16
    hidden_size = 32
    num_layers = 2
    output_size = 10
    seq_len = 8
    batch = 2

    key = jax.random.PRNGKey(0)
    key, pkey, xkey = jax.random.split(key, 3)
    params = init_params(pkey, input_size, hidden_size, num_layers, output_size)

    # x: (seq_len, batch, input_size) -- PyTorch non-batch-first LSTM layout
    x = jax.random.normal(xkey, (seq_len, batch, input_size), jnp.float32)

    out = rnn_forward(x, params, num_layers)
    out = jax.block_until_ready(out)

    assert out.shape == (batch, output_size)
    # log-softmax rows should sum to ~1 in prob space
    assert jnp.allclose(jnp.exp(out).sum(axis=-1), 1.0, atol=1e-4)

    # Check against a pure-JAX reference using the same bf16 matmul dtypes.
    ref = jax.block_until_ready(rnn_reference(x, params, num_layers))
    assert jnp.allclose(out, ref, atol=1e-2, rtol=1e-2), (
        f"max abs diff {jnp.max(jnp.abs(out - ref))}")

    print("KERNEL_OK")
</pallas_src>

<mosaic_0001>
module attributes {stable_mosaic.version = 11 : i64} {
  func.func @kernel(%arg0: memref<64x16xbf16, #tpu.memory_space<vmem>>, %arg1: memref<16x128xbf16, #tpu.memory_space<vmem>>, %arg2: memref<32x128xbf16, #tpu.memory_space<vmem>>, %arg3: memref<1x128xf32, #tpu.memory_space<vmem>>, %arg4: memref<32x128xbf16, #tpu.memory_space<vmem>>, %arg5: memref<32x128xbf16, #tpu.memory_space<vmem>>, %arg6: memref<1x128xf32, #tpu.memory_space<vmem>>, %arg7: memref<32x128xbf16, #tpu.memory_space<vmem>>, %arg8: memref<1x128xf32, #tpu.memory_space<vmem>>, %arg9: memref<8x128xf32, #tpu.memory_space<vmem>>) attributes {dimension_semantics = [], scalar_prefetch = 0 : i64, scratch_operands = 0 : i64, tpu.core_type = #tpu.core_type<tc>} {
    %c0 = arith.constant 0 : index
    %c0_0 = arith.constant 0 : index
    %0 = vector.load %arg1[%c0, %c0_0] : memref<16x128xbf16, #tpu.memory_space<vmem>>, vector<16x128xbf16>
    %c0_1 = arith.constant 0 : index
    %c0_2 = arith.constant 0 : index
    %1 = vector.load %arg4[%c0_1, %c0_2] : memref<32x128xbf16, #tpu.memory_space<vmem>>, vector<32x128xbf16>
    %c0_3 = arith.constant 0 : index
    %c0_4 = arith.constant 0 : index
    %2 = vector.load %arg2[%c0_3, %c0_4] : memref<32x128xbf16, #tpu.memory_space<vmem>>, vector<32x128xbf16>
    %c0_5 = arith.constant 0 : index
    %c0_6 = arith.constant 0 : index
    %3 = vector.load %arg5[%c0_5, %c0_6] : memref<32x128xbf16, #tpu.memory_space<vmem>>, vector<32x128xbf16>
    %c0_7 = arith.constant 0 : index
    %c0_8 = arith.constant 0 : index
    %4 = vector.load %arg3[%c0_7, %c0_8] : memref<1x128xf32, #tpu.memory_space<vmem>>, vector<1x128xf32>
    %c0_9 = arith.constant 0 : index
    %c0_10 = arith.constant 0 : index
    %5 = vector.load %arg6[%c0_9, %c0_10] : memref<1x128xf32, #tpu.memory_space<vmem>>, vector<1x128xf32>
    %c0_11 = arith.constant 0 : index
    %c0_12 = arith.constant 0 : index
    %6 = vector.load %arg0[%c0_11, %c0_12] : memref<64x16xbf16, #tpu.memory_space<vmem>>, vector<64x16xbf16>
    %cst = arith.constant dense<0.000000e+00> : vector<64x128xf32>
    %7 = tpu.matmul %6, %0, %cst {dimension_numbers = #tpu.dot_dimension_numbers<[1], [0], [0], [1], [0, 0, 1, 1], [], []>} : vector<64x16xbf16>, vector<16x128xbf16>, vector<64x128xf32> -> vector<64x128xf32>
    %8 = vector.broadcast %4 : vector<1x128xf32> to vector<64x128xf32>
    %9 = arith.addf %7, %8 : vector<64x128xf32>
    %cst_13 = arith.constant 0.000000e+00 : f32
    %10 = vector.broadcast %cst_13 : f32 to vector<8x32xf32>
    %cst_14 = arith.constant 0.000000e+00 : f32
    %11 = vector.broadcast %cst_14 : f32 to vector<8x32xf32>
    %cst_15 = arith.constant 0.000000e+00 : f32
    %12 = vector.broadcast %cst_15 : f32 to vector<8x32xf32>
    %cst_16 = arith.constant 0.000000e+00 : f32
    %13 = vector.broadcast %cst_16 : f32 to vector<8x32xf32>
    %14 = vector.extract_strided_slice %9 {offsets = [0, 0], sizes = [8, 128], strides = [1, 1]} : vector<64x128xf32> to vector<8x128xf32>
    %15 = arith.truncf %10 : vector<8x32xf32> to vector<8x32xbf16>
    %cst_17 = arith.constant dense<0.000000e+00> : vector<8x128xf32>
    %16 = tpu.matmul %15, %2, %cst_17 {dimension_numbers = #tpu.dot_dimension_numbers<[1], [0], [0], [1], [0, 0, 1, 1], [], []>} : vector<8x32xbf16>, vector<32x128xbf16>, vector<8x128xf32> -> vector<8x128xf32>
    %17 = arith.addf %14, %16 : vector<8x128xf32>
    %18 = vector.extract_strided_slice %17 {offsets = [0, 0], sizes = [8, 96], strides = [1, 1]} : vector<8x128xf32> to vector<8x96xf32>
    %cst_18 = arith.constant 5.000000e-01 : f32
    %19 = vector.broadcast %cst_18 : f32 to vector<8x96xf32>
    %20 = arith.mulf %19, %18 : vector<8x96xf32>
    %21 = math.tanh %20 : vector<8x96xf32>
    %cst_19 = arith.constant 5.000000e-01 : f32
    %22 = vector.broadcast %cst_19 : f32 to vector<8x96xf32>
    %23 = arith.mulf %22, %21 : vector<8x96xf32>
    %cst_20 = arith.constant 5.000000e-01 : f32
    %24 = vector.broadcast %cst_20 : f32 to vector<8x96xf32>
    %25 = arith.addf %23, %24 : vector<8x96xf32>
    %26 = vector.extract_strided_slice %17 {offsets = [0, 96], sizes = [8, 32], strides = [1, 1]} : vector<8x128xf32> to vector<8x32xf32>
    %27 = math.tanh %26 : vector<8x32xf32>
    %28 = vector.extract_strided_slice %25 {offsets = [0, 0], sizes = [8, 32], strides = [1, 1]} : vector<8x96xf32> to vector<8x32xf32>
    %29 = vector.extract_strided_slice %25 {offsets = [0, 32], sizes = [8, 32], strides = [1, 1]} : vector<8x96xf32> to vector<8x32xf32>
    %30 = vector.extract_strided_slice %25 {offsets = [0, 64], sizes = [8, 32], strides = [1, 1]} : vector<8x96xf32> to vector<8x32xf32>
    %31 = arith.mulf %29, %12 : vector<8x32xf32>
    %32 = arith.mulf %28, %27 : vector<8x32xf32>
    %33 = arith.addf %31, %32 : vector<8x32xf32>
    %34 = math.tanh %33 : vector<8x32xf32>
    %35 = arith.mulf %30, %34 : vector<8x32xf32>
    %36 = arith.truncf %35 : vector<8x32xf32> to vector<8x32xbf16>
    %37 = vector.extract_strided_slice %9 {offsets = [8, 0], sizes = [8, 128], strides = [1, 1]} : vector<64x128xf32> to vector<8x128xf32>
    %38 = arith.truncf %35 : vector<8x32xf32> to vector<8x32xbf16>
    %cst_21 = arith.constant dense<0.000000e+00> : vector<8x128xf32>
    %39 = tpu.matmul %38, %2, %cst_21 {dimension_numbers = #tpu.dot_dimension_numbers<[1], [0], [0], [1], [0, 0, 1, 1], [], []>} : vector<8x32xbf16>, vector<32x128xbf16>, vector<8x128xf32> -> vector<8x128xf32>
    %40 = arith.addf %37, %39 : vector<8x128xf32>
    %41 = vector.extract_strided_slice %40 {offsets = [0, 0], sizes = [8, 96], strides = [1, 1]} : vector<8x128xf32> to vector<8x96xf32>
    %cst_22 = arith.constant 5.000000e-01 : f32
    %42 = vector.broadcast %cst_22 : f32 to vector<8x96xf32>
    %43 = arith.mulf %42, %41 : vector<8x96xf32>
    %44 = math.tanh %43 : vector<8x96xf32>
    %cst_23 = arith.constant 5.000000e-01 : f32
    %45 = vector.broadcast %cst_23 : f32 to vector<8x96xf32>
    %46 = arith.mulf %45, %44 : vector<8x96xf32>
    %cst_24 = arith.constant 5.000000e-01 : f32
    %47 = vector.broadcast %cst_24 : f32 to vector<8x96xf32>
    %48 = arith.addf %46, %47 : vector<8x96xf32>
    %49 = vector.extract_strided_slice %40 {offsets = [0, 96], sizes = [8, 32], strides = [1, 1]} : vector<8x128xf32> to vector<8x32xf32>
    %50 = math.tanh %49 : vector<8x32xf32>
    %51 = vector.extract_strided_slice %48 {offsets = [0, 0], sizes = [8, 32], strides = [1, 1]} : vector<8x96xf32> to vector<8x32xf32>
    %52 = vector.extract_strided_slice %48 {offsets = [0, 32], sizes = [8, 32], strides = [1, 1]} : vector<8x96xf32> to vector<8x32xf32>
    %53 = vector.extract_strided_slice %48 {offsets = [0, 64], sizes = [8, 32], strides = [1, 1]} : vector<8x96xf32> to vector<8x32xf32>
    %54 = arith.mulf %52, %33 : vector<8x32xf32>
    %55 = arith.mulf %51, %50 : vector<8x32xf32>
    %56 = arith.addf %54, %55 : vector<8x32xf32>
    %57 = math.tanh %56 : vector<8x32xf32>
    %58 = arith.mulf %53, %57 : vector<8x32xf32>
    %cst_25 = arith.constant dense<0.000000e+00> : vector<8x128xf32>
    %59 = tpu.matmul %36, %1, %cst_25 {dimension_numbers = #tpu.dot_dimension_numbers<[1], [0], [0], [1], [0, 0, 1, 1], [], []>} : vector<8x32xbf16>, vector<32x128xbf16>, vector<8x128xf32> -> vector<8x128xf32>
    %60 = vector.broadcast %5 : vector<1x128xf32> to vector<8x128xf32>
    %61 = arith.addf %59, %60 : vector<8x128xf32>
    %62 = arith.truncf %11 : vector<8x32xf32> to vector<8x32xbf16>
    %cst_26 = arith.constant dense<0.000000e+00> : vector<8x128xf32>
    %63 = tpu.matmul %62, %3, %cst_26 {dimension_numbers = #tpu.dot_dimension_numbers<[1], [0], [0], [1], [0, 0, 1, 1], [], []>} : vector<8x32xbf16>, vector<32x128xbf16>, vector<8x128xf32> -> vector<8x128xf32>
    %64 = arith.addf %61, %63 : vector<8x128xf32>
    %65 = vector.extract_strided_slice %64 {offsets = [0, 0], sizes = [8, 96], strides = [1, 1]} : vector<8x128xf32> to vector<8x96xf32>
    %cst_27 = arith.constant 5.000000e-01 : f32
    %66 = vector.broadcast %cst_27 : f32 to vector<8x96xf32>
    %67 = arith.mulf %66, %65 : vector<8x96xf32>
    %68 = math.tanh %67 : vector<8x96xf32>
    %cst_28 = arith.constant 5.000000e-01 : f32
    %69 = vector.broadcast %cst_28 : f32 to vector<8x96xf32>
    %70 = arith.mulf %69, %68 : vector<8x96xf32>
    %cst_29 = arith.constant 5.000000e-01 : f32
    %71 = vector.broadcast %cst_29 : f32 to vector<8x96xf32>
    %72 = arith.addf %70, %71 : vector<8x96xf32>
    %73 = vector.extract_strided_slice %64 {offsets = [0, 96], sizes = [8, 32], strides = [1, 1]} : vector<8x128xf32> to vector<8x32xf32>
    %74 = math.tanh %73 : vector<8x32xf32>
    %75 = vector.extract_strided_slice %72 {offsets = [0, 0], sizes = [8, 32], strides = [1, 1]} : vector<8x96xf32> to vector<8x32xf32>
    %76 = vector.extract_strided_slice %72 {offsets = [0, 32], sizes = [8, 32], strides = [1, 1]} : vector<8x96xf32> to vector<8x32xf32>
    %77 = vector.extract_strided_slice %72 {offsets = [0, 64], sizes = [8, 32], strides = [1, 1]} : vector<8x96xf32> to vector<8x32xf32>
    %78 = arith.mulf %76, %13 : vector<8x32xf32>
    %79 = arith.mulf %75, %74 : vector<8x32xf32>
    %80 = arith.addf %78, %79 : vector<8x32xf32>
    %81 = math.tanh %80 : vector<8x32xf32>
    %82 = arith.mulf %77, %81 : vector<8x32xf32>
    %83 = arith.truncf %58 : vector<8x32xf32> to vector<8x32xbf16>
    %84 = vector.extract_strided_slice %9 {offsets = [16, 0], sizes = [8, 128], strides = [1, 1]} : vector<64x128xf32> to vector<8x128xf32>
    %85 = arith.truncf %58 : vector<8x32xf32> to vector<8x32xbf16>
    %cst_30 = arith.constant dense<0.000000e+00> : vector<8x128xf32>
    %86 = tpu.matmul %85, %2, %cst_30 {dimension_numbers = #tpu.dot_dimension_numbers<[1], [0], [0], [1], [0, 0, 1, 1], [], []>} : vector<8x32xbf16>, vector<32x128xbf16>, vector<8x128xf32> -> vector<8x128xf32>
    %87 = arith.addf %84, %86 : vector<8x128xf32>
    %88 = vector.extract_strided_slice %87 {offsets = [0, 0], sizes = [8, 96], strides = [1, 1]} : vector<8x128xf32> to vector<8x96xf32>
    %cst_31 = arith.constant 5.000000e-01 : f32
    %89 = vector.broadcast %cst_31 : f32 to vector<8x96xf32>
    %90 = arith.mulf %89, %88 : vector<8x96xf32>
    %91 = math.tanh %90 : vector<8x96xf32>
    %cst_32 = arith.constant 5.000000e-01 : f32
    %92 = vector.broadcast %cst_32 : f32 to vector<8x96xf32>
    %93 = arith.mulf %92, %91 : vector<8x96xf32>
    %cst_33 = arith.constant 5.000000e-01 : f32
    %94 = vector.broadcast %cst_33 : f32 to vector<8x96xf32>
    %95 = arith.addf %93, %94 : vector<8x96xf32>
    %96 = vector.extract_strided_slice %87 {offsets = [0, 96], sizes = [8, 32], strides = [1, 1]} : vector<8x128xf32> to vector<8x32xf32>
    %97 = math.tanh %96 : vector<8x32xf32>
    %98 = vector.extract_strided_slice %95 {offsets = [0, 0], sizes = [8, 32], strides = [1, 1]} : vector<8x96xf32> to vector<8x32xf32>
    %99 = vector.extract_strided_slice %95 {offsets = [0, 32], sizes = [8, 32], strides = [1, 1]} : vector<8x96xf32> to vector<8x32xf32>
    %100 = vector.extract_strided_slice %95 {offsets = [0, 64], sizes = [8, 32], strides = [1, 1]} : vector<8x96xf32> to vector<8x32xf32>
    %101 = arith.mulf %99, %56 : vector<8x32xf32>
    %102 = arith.mulf %98, %97 : vector<8x32xf32>
    %103 = arith.addf %101, %102 : vector<8x32xf32>
    %104 = math.tanh %103 : vector<8x32xf32>
    %105 = arith.mulf %100, %104 : vector<8x32xf32>
    %cst_34 = arith.constant dense<0.000000e+00> : vector<8x128xf32>
    %106 = tpu.matmul %83, %1, %cst_34 {dimension_numbers = #tpu.dot_dimension_numbers<[1], [0], [0], [1], [0, 0, 1, 1], [], []>} : vector<8x32xbf16>, vector<32x128xbf16>, vector<8x128xf32> -> vector<8x128xf32>
    %107 = vector.broadcast %5 : vector<1x128xf32> to vector<8x128xf32>
    %108 = arith.addf %106, %107 : vector<8x128xf32>
    %109 = arith.truncf %82 : vector<8x32xf32> to vector<8x32xbf16>
    %cst_35 = arith.constant dense<0.000000e+00> : vector<8x128xf32>
    %110 = tpu.matmul %109, %3, %cst_35 {dimension_numbers = #tpu.dot_dimension_numbers<[1], [0], [0], [1], [0, 0, 1, 1], [], []>} : vector<8x32xbf16>, vector<32x128xbf16>, vector<8x128xf32> -> vector<8x128xf32>
    %111 = arith.addf %108, %110 : vector<8x128xf32>
    %112 = vector.extract_strided_slice %111 {offsets = [0, 0], sizes = [8, 96], strides = [1, 1]} : vector<8x128xf32> to vector<8x96xf32>
    %cst_36 = arith.constant 5.000000e-01 : f32
    %113 = vector.broadcast %cst_36 : f32 to vector<8x96xf32>
    %114 = arith.mulf %113, %112 : vector<8x96xf32>
    %115 = math.tanh %114 : vector<8x96xf32>
    %cst_37 = arith.constant 5.000000e-01 : f32
    %116 = vector.broadcast %cst_37 : f32 to vector<8x96xf32>
    %117 = arith.mulf %116, %115 : vector<8x96xf32>
    %cst_38 = arith.constant 5.000000e-01 : f32
    %118 = vector.broadcast %cst_38 : f32 to vector<8x96xf32>
    %119 = arith.addf %117, %118 : vector<8x96xf32>
    %120 = vector.extract_strided_slice %111 {offsets = [0, 96], sizes = [8, 32], strides = [1, 1]} : vector<8x128xf32> to vector<8x32xf32>
    %121 = math.tanh %120 : vector<8x32xf32>
    %122 = vector.extract_strided_slice %119 {offsets = [0, 0], sizes = [8, 32], strides = [1, 1]} : vector<8x96xf32> to vector<8x32xf32>
    %123 = vector.extract_strided_slice %119 {offsets = [0, 32], sizes = [8, 32], strides = [1, 1]} : vector<8x96xf32> to vector<8x32xf32>
    %124 = vector.extract_strided_slice %119 {offsets = [0, 64], sizes = [8, 32], strides = [1, 1]} : vector<8x96xf32> to vector<8x32xf32>
    %125 = arith.mulf %123, %80 : vector<8x32xf32>
    %126 = arith.mulf %122, %121 : vector<8x32xf32>
    %127 = arith.addf %125, %126 : vector<8x32xf32>
    %128 = math.tanh %127 : vector<8x32xf32>
    %129 = arith.mulf %124, %128 : vector<8x32xf32>
    %130 = arith.truncf %105 : vector<8x32xf32> to vector<8x32xbf16>
    %131 = vector.extract_strided_slice %9 {offsets = [24, 0], sizes = [8, 128], strides = [1, 1]} : vector<64x128xf32> to vector<8x128xf32>
    %132 = arith.truncf %105 : vector<8x32xf32> to vector<8x32xbf16>
    %cst_39 = arith.constant dense<0.000000e+00> : vector<8x128xf32>
    %133 = tpu.matmul %132, %2, %cst_39 {dimension_numbers = #tpu.dot_dimension_numbers<[1], [0], [0], [1], [0, 0, 1, 1], [], []>} : vector<8x32xbf16>, vector<32x128xbf16>, vector<8x128xf32> -> vector<8x128xf32>
    %134 = arith.addf %131, %133 : vector<8x128xf32>
    %135 = vector.extract_strided_slice %134 {offsets = [0, 0], sizes = [8, 96], strides = [1, 1]} : vector<8x128xf32> to vector<8x96xf32>
    %cst_40 = arith.constant 5.000000e-01 : f32
    %136 = vector.broadcast %cst_40 : f32 to vector<8x96xf32>
    %137 = arith.mulf %136, %135 : vector<8x96xf32>
    %138 = math.tanh %137 : vector<8x96xf32>
    %cst_41 = arith.constant 5.000000e-01 : f32
    %139 = vector.broadcast %cst_41 : f32 to vector<8x96xf32>
    %140 = arith.mulf %139, %138 : vector<8x96xf32>
    %cst_42 = arith.constant 5.000000e-01 : f32
    %141 = vector.broadcast %cst_42 : f32 to vector<8x96xf32>
    %142 = arith.addf %140, %141 : vector<8x96xf32>
    %143 = vector.extract_strided_slice %134 {offsets = [0, 96], sizes = [8, 32], strides = [1, 1]} : vector<8x128xf32> to vector<8x32xf32>
    %144 = math.tanh %143 : vector<8x32xf32>
    %145 = vector.extract_strided_slice %142 {offsets = [0, 0], sizes = [8, 32], strides = [1, 1]} : vector<8x96xf32> to vector<8x32xf32>
    %146 = vector.extract_strided_slice %142 {offsets = [0, 32], sizes = [8, 32], strides = [1, 1]} : vector<8x96xf32> to vector<8x32xf32>
    %147 = vector.extract_strided_slice %142 {offsets = [0, 64], sizes = [8, 32], strides = [1, 1]} : vector<8x96xf32> to vector<8x32xf32>
    %148 = arith.mulf %146, %103 : vector<8x32xf32>
    %149 = arith.mulf %145, %144 : vector<8x32xf32>
    %150 = arith.addf %148, %149 : vector<8x32xf32>
    %151 = math.tanh %150 : vector<8x32xf32>
    %152 = arith.mulf %147, %151 : vector<8x32xf32>
    %cst_43 = arith.constant dense<0.000000e+00> : vector<8x128xf32>
    %153 = tpu.matmul %130, %1, %cst_43 {dimension_numbers = #tpu.dot_dimension_numbers<[1], [0], [0], [1], [0, 0, 1, 1], [], []>} : vector<8x32xbf16>, vector<32x128xbf16>, vector<8x128xf32> -> vector<8x128xf32>
    %154 = vector.broadcast %5 : vector<1x128xf32> to vector<8x128xf32>
    %155 = arith.addf %153, %154 : vector<8x128xf32>
    %156 = arith.truncf %129 : vector<8x32xf32> to vector<8x32xbf16>
    %cst_44 = arith.constant dense<0.000000e+00> : vector<8x128xf32>
    %157 = tpu.matmul %156, %3, %cst_44 {dimension_numbers = #tpu.dot_dimension_numbers<[1], [0], [0], [1], [0, 0, 1, 1], [], []>} : vector<8x32xbf16>, vector<32x128xbf16>, vector<8x128xf32> -> vector<8x128xf32>
    %158 = arith.addf %155, %157 : vector<8x128xf32>
    %159 = vector.extract_strided_slice %158 {offsets = [0, 0], sizes = [8, 96], strides = [1, 1]} : vector<8x128xf32> to vector<8x96xf32>
    %cst_45 = arith.constant 5.000000e-01 : f32
    %160 = vector.broadcast %cst_45 : f32 to vector<8x96xf32>
    %161 = arith.mulf %160, %159 : vector<8x96xf32>
    %162 = math.tanh %161 : vector<8x96xf32>
    %cst_46 = arith.constant 5.000000e-01 : f32
    %163 = vector.broadcast %cst_46 : f32 to vector<8x96xf32>
    %164 = arith.mulf %163, %162 : vector<8x96xf32>
    %cst_47 = arith.constant 5.000000e-01 : f32
    %165 = vector.broadcast %cst_47 : f32 to vector<8x96xf32>
    %166 = arith.addf %164, %165 : vector<8x96xf32>
    %167 = vector.extract_strided_slice %158 {offsets = [0, 96], sizes = [8, 32], strides = [1, 1]} : vector<8x128xf32> to vector<8x32xf32>
    %168 = math.tanh %167 : vector<8x32xf32>
    %169 = vector.extract_strided_slice %166 {offsets = [0, 0], sizes = [8, 32], strides = [1, 1]} : vector<8x96xf32> to vector<8x32xf32>
    %170 = vector.extract_strided_slice %166 {offsets = [0, 32], sizes = [8, 32], strides = [1, 1]} : vector<8x96xf32> to vector<8x32xf32>
    %171 = vector.extract_strided_slice %166 {offsets = [0, 64], sizes = [8, 32], strides = [1, 1]} : vector<8x96xf32> to vector<8x32xf32>
    %172 = arith.mulf %170, %127 : vector<8x32xf32>
    %173 = arith.mulf %169, %168 : vector<8x32xf32>
    %174 = arith.addf %172, %173 : vector<8x32xf32>
    %175 = math.tanh %174 : vector<8x32xf32>
    %176 = arith.mulf %171, %175 : vector<8x32xf32>
    %177 = arith.truncf %152 : vector<8x32xf32> to vector<8x32xbf16>
    %178 = vector.extract_strided_slice %9 {offsets = [32, 0], sizes = [8, 128], strides = [1, 1]} : vector<64x128xf32> to vector<8x128xf32>
    %179 = arith.truncf %152 : vector<8x32xf32> to vector<8x32xbf16>
    %cst_48 = arith.constant dense<0.000000e+00> : vector<8x128xf32>
    %180 = tpu.matmul %179, %2, %cst_48 {dimension_numbers = #tpu.dot_dimension_numbers<[1], [0], [0], [1], [0, 0, 1, 1], [], []>} : vector<8x32xbf16>, vector<32x128xbf16>, vector<8x128xf32> -> vector<8x128xf32>
    %181 = arith.addf %178, %180 : vector<8x128xf32>
    %182 = vector.extract_strided_slice %181 {offsets = [0, 0], sizes = [8, 96], strides = [1, 1]} : vector<8x128xf32> to vector<8x96xf32>
    %cst_49 = arith.constant 5.000000e-01 : f32
    %183 = vector.broadcast %cst_49 : f32 to vector<8x96xf32>
    %184 = arith.mulf %183, %182 : vector<8x96xf32>
    %185 = math.tanh %184 : vector<8x96xf32>
    %cst_50 = arith.constant 5.000000e-01 : f32
    %186 = vector.broadcast %cst_50 : f32 to vector<8x96xf32>
    %187 = arith.mulf %186, %185 : vector<8x96xf32>
    %cst_51 = arith.constant 5.000000e-01 : f32
    %188 = vector.broadcast %cst_51 : f32 to vector<8x96xf32>
    %189 = arith.addf %187, %188 : vector<8x96xf32>
    %190 = vector.extract_strided_slice %181 {offsets = [0, 96], sizes = [8, 32], strides = [1, 1]} : vector<8x128xf32> to vector<8x32xf32>
    %191 = math.tanh %190 : vector<8x32xf32>
    %192 = vector.extract_strided_slice %189 {offsets = [0, 0], sizes = [8, 32], strides = [1, 1]} : vector<8x96xf32> to vector<8x32xf32>
    %193 = vector.extract_strided_slice %189 {offsets = [0, 32], sizes = [8, 32], strides = [1, 1]} : vector<8x96xf32> to vector<8x32xf32>
    %194 = vector.extract_strided_slice %189 {offsets = [0, 64], sizes = [8, 32], strides = [1, 1]} : vector<8x96xf32> to vector<8x32xf32>
    %195 = arith.mulf %193, %150 : vector<8x32xf32>
    %196 = arith.mulf %192, %191 : vector<8x32xf32>
    %197 = arith.addf %195, %196 : vector<8x32xf32>
    %198 = math.tanh %197 : vector<8x32xf32>
    %199 = arith.mulf %194, %198 : vector<8x32xf32>
    %cst_52 = arith.constant dense<0.000000e+00> : vector<8x128xf32>
    %200 = tpu.matmul %177, %1, %cst_52 {dimension_numbers = #tpu.dot_dimension_numbers<[1], [0], [0], [1], [0, 0, 1, 1], [], []>} : vector<8x32xbf16>, vector<32x128xbf16>, vector<8x128xf32> -> vector<8x128xf32>
    %201 = vector.broadcast %5 : vector<1x128xf32> to vector<8x128xf32>
    %202 = arith.addf %200, %201 : vector<8x128xf32>
    %203 = arith.truncf %176 : vector<8x32xf32> to vector<8x32xbf16>
    %cst_53 = arith.constant dense<0.000000e+00> : vector<8x128xf32>
    %204 = tpu.matmul %203, %3, %cst_53 {dimension_numbers = #tpu.dot_dimension_numbers<[1], [0], [0], [1], [0, 0, 1, 1], [], []>} : vector<8x32xbf16>, vector<32x128xbf16>, vector<8x128xf32> -> vector<8x128xf32>
    %205 = arith.addf %202, %204 : vector<8x128xf32>
    %206 = vector.extract_strided_slice %205 {offsets = [0, 0], sizes = [8, 96], strides = [1, 1]} : vector<8x128xf32> to vector<8x96xf32>
    %cst_54 = arith.constant 5.000000e-01 : f32
    %207 = vector.broadcast %cst_54 : f32 to vector<8x96xf32>
    %208 = arith.mulf %207, %206 : vector<8x96xf32>
    %209 = math.tanh %208 : vector<8x96xf32>
    %cst_55 = arith.constant 5.000000e-01 : f32
    %210 = vector.broadcast %cst_55 : f32 to vector<8x96xf32>
    %211 = arith.mulf %210, %209 : vector<8x96xf32>
    %cst_56 = arith.constant 5.000000e-01 : f32
    %212 = vector.broadcast %cst_56 : f32 to vector<8x96xf32>
    %213 = arith.addf %211, %212 : vector<8x96xf32>
    %214 = vector.extract_strided_slice %205 {offsets = [0, 96], sizes = [8, 32], strides = [1, 1]} : vector<8x128xf32> to vector<8x32xf32>
    %215 = math.tanh %214 : vector<8x32xf32>
    %216 = vector.extract_strided_slice %213 {offsets = [0, 0], sizes = [8, 32], strides = [1, 1]} : vector<8x96xf32> to vector<8x32xf32>
    %217 = vector.extract_strided_slice %213 {offsets = [0, 32], sizes = [8, 32], strides = [1, 1]} : vector<8x96xf32> to vector<8x32xf32>
    %218 = vector.extract_strided_slice %213 {offsets = [0, 64], sizes = [8, 32], strides = [1, 1]} : vector<8x96xf32> to vector<8x32xf32>
    %219 = arith.mulf %217, %174 : vector<8x32xf32>
    %220 = arith.mulf %216, %215 : vector<8x32xf32>
    %221 = arith.addf %219, %220 : vector<8x32xf32>
    %222 = math.tanh %221 : vector<8x32xf32>
    %223 = arith.mulf %218, %222 : vector<8x32xf32>
    %224 = arith.truncf %199 : vector<8x32xf32> to vector<8x32xbf16>
    %225 = vector.extract_strided_slice %9 {offsets = [40, 0], sizes = [8, 128], strides = [1, 1]} : vector<64x128xf32> to vector<8x128xf32>
    %226 = arith.truncf %199 : vector<8x32xf32> to vector<8x32xbf16>
    %cst_57 = arith.constant dense<0.000000e+00> : vector<8x128xf32>
    %227 = tpu.matmul %226, %2, %cst_57 {dimension_numbers = #tpu.dot_dimension_numbers<[1], [0], [0], [1], [0, 0, 1, 1], [], []>} : vector<8x32xbf16>, vector<32x128xbf16>, vector<8x128xf32> -> vector<8x128xf32>
    %228 = arith.addf %225, %227 : vector<8x128xf32>
    %229 = vector.extract_strided_slice %228 {offsets = [0, 0], sizes = [8, 96], strides = [1, 1]} : vector<8x128xf32> to vector<8x96xf32>
    %cst_58 = arith.constant 5.000000e-01 : f32
    %230 = vector.broadcast %cst_58 : f32 to vector<8x96xf32>
    %231 = arith.mulf %230, %229 : vector<8x96xf32>
    %232 = math.tanh %231 : vector<8x96xf32>
    %cst_59 = arith.constant 5.000000e-01 : f32
    %233 = vector.broadcast %cst_59 : f32 to vector<8x96xf32>
    %234 = arith.mulf %233, %232 : vector<8x96xf32>
    %cst_60 = arith.constant 5.000000e-01 : f32
    %235 = vector.broadcast %cst_60 : f32 to vector<8x96xf32>
    %236 = arith.addf %234, %235 : vector<8x96xf32>
    %237 = vector.extract_strided_slice %228 {offsets = [0, 96], sizes = [8, 32], strides = [1, 1]} : vector<8x128xf32> to vector<8x32xf32>
    %238 = math.tanh %237 : vector<8x32xf32>
    %239 = vector.extract_strided_slice %236 {offsets = [0, 0], sizes = [8, 32], strides = [1, 1]} : vector<8x96xf32> to vector<8x32xf32>
    %240 = vector.extract_strided_slice %236 {offsets = [0, 32], sizes = [8, 32], strides = [1, 1]} : vector<8x96xf32> to vector<8x32xf32>
    %241 = vector.extract_strided_slice %236 {offsets = [0, 64], sizes = [8, 32], strides = [1, 1]} : vector<8x96xf32> to vector<8x32xf32>
    %242 = arith.mulf %240, %197 : vector<8x32xf32>
    %243 = arith.mulf %239, %238 : vector<8x32xf32>
    %244 = arith.addf %242, %243 : vector<8x32xf32>
    %245 = math.tanh %244 : vector<8x32xf32>
    %246 = arith.mulf %241, %245 : vector<8x32xf32>
    %cst_61 = arith.constant dense<0.000000e+00> : vector<8x128xf32>
    %247 = tpu.matmul %224, %1, %cst_61 {dimension_numbers = #tpu.dot_dimension_numbers<[1], [0], [0], [1], [0, 0, 1, 1], [], []>} : vector<8x32xbf16>, vector<32x128xbf16>, vector<8x128xf32> -> vector<8x128xf32>
    %248 = vector.broadcast %5 : vector<1x128xf32> to vector<8x128xf32>
    %249 = arith.addf %247, %248 : vector<8x128xf32>
    %250 = arith.truncf %223 : vector<8x32xf32> to vector<8x32xbf16>
    %cst_62 = arith.constant dense<0.000000e+00> : vector<8x128xf32>
    %251 = tpu.matmul %250, %3, %cst_62 {dimension_numbers = #tpu.dot_dimension_numbers<[1], [0], [0], [1], [0, 0, 1, 1], [], []>} : vector<8x32xbf16>, vector<32x128xbf16>, vector<8x128xf32> -> vector<8x128xf32>
    %252 = arith.addf %249, %251 : vector<8x128xf32>
    %253 = vector.extract_strided_slice %252 {offsets = [0, 0], sizes = [8, 96], strides = [1, 1]} : vector<8x128xf32> to vector<8x96xf32>
    %cst_63 = arith.constant 5.000000e-01 : f32
    %254 = vector.broadcast %cst_63 : f32 to vector<8x96xf32>
    %255 = arith.mulf %254, %253 : vector<8x96xf32>
    %256 = math.tanh %255 : vector<8x96xf32>
    %cst_64 = arith.constant 5.000000e-01 : f32
    %257 = vector.broadcast %cst_64 : f32 to vector<8x96xf32>
    %258 = arith.mulf %257, %256 : vector<8x96xf32>
    %cst_65 = arith.constant 5.000000e-01 : f32
    %259 = vector.broadcast %cst_65 : f32 to vector<8x96xf32>
    %260 = arith.addf %258, %259 : vector<8x96xf32>
    %261 = vector.extract_strided_slice %252 {offsets = [0, 96], sizes = [8, 32], strides = [1, 1]} : vector<8x128xf32> to vector<8x32xf32>
    %262 = math.tanh %261 : vector<8x32xf32>
    %263 = vector.extract_strided_slice %260 {offsets = [0, 0], sizes = [8, 32], strides = [1, 1]} : vector<8x96xf32> to vector<8x32xf32>
    %264 = vector.extract_strided_slice %260 {offsets = [0, 32], sizes = [8, 32], strides = [1, 1]} : vector<8x96xf32> to vector<8x32xf32>
    %265 = vector.extract_strided_slice %260 {offsets = [0, 64], sizes = [8, 32], strides = [1, 1]} : vector<8x96xf32> to vector<8x32xf32>
    %266 = arith.mulf %264, %221 : vector<8x32xf32>
    %267 = arith.mulf %263, %262 : vector<8x32xf32>
    %268 = arith.addf %266, %267 : vector<8x32xf32>
    %269 = math.tanh %268 : vector<8x32xf32>
    %270 = arith.mulf %265, %269 : vector<8x32xf32>
    %271 = arith.truncf %246 : vector<8x32xf32> to vector<8x32xbf16>
    %272 = vector.extract_strided_slice %9 {offsets = [48, 0], sizes = [8, 128], strides = [1, 1]} : vector<64x128xf32> to vector<8x128xf32>
    %273 = arith.truncf %246 : vector<8x32xf32> to vector<8x32xbf16>
    %cst_66 = arith.constant dense<0.000000e+00> : vector<8x128xf32>
    %274 = tpu.matmul %273, %2, %cst_66 {dimension_numbers = #tpu.dot_dimension_numbers<[1], [0], [0], [1], [0, 0, 1, 1], [], []>} : vector<8x32xbf16>, vector<32x128xbf16>, vector<8x128xf32> -> vector<8x128xf32>
    %275 = arith.addf %272, %274 : vector<8x128xf32>
    %276 = vector.extract_strided_slice %275 {offsets = [0, 0], sizes = [8, 96], strides = [1, 1]} : vector<8x128xf32> to vector<8x96xf32>
    %cst_67 = arith.constant 5.000000e-01 : f32
    %277 = vector.broadcast %cst_67 : f32 to vector<8x96xf32>
    %278 = arith.mulf %277, %276 : vector<8x96xf32>
    %279 = math.tanh %278 : vector<8x96xf32>
    %cst_68 = arith.constant 5.000000e-01 : f32
    %280 = vector.broadcast %cst_68 : f32 to vector<8x96xf32>
    %281 = arith.mulf %280, %279 : vector<8x96xf32>
    %cst_69 = arith.constant 5.000000e-01 : f32
    %282 = vector.broadcast %cst_69 : f32 to vector<8x96xf32>
    %283 = arith.addf %281, %282 : vector<8x96xf32>
    %284 = vector.extract_strided_slice %275 {offsets = [0, 96], sizes = [8, 32], strides = [1, 1]} : vector<8x128xf32> to vector<8x32xf32>
    %285 = math.tanh %284 : vector<8x32xf32>
    %286 = vector.extract_strided_slice %283 {offsets = [0, 0], sizes = [8, 32], strides = [1, 1]} : vector<8x96xf32> to vector<8x32xf32>
    %287 = vector.extract_strided_slice %283 {offsets = [0, 32], sizes = [8, 32], strides = [1, 1]} : vector<8x96xf32> to vector<8x32xf32>
    %288 = vector.extract_strided_slice %283 {offsets = [0, 64], sizes = [8, 32], strides = [1, 1]} : vector<8x96xf32> to vector<8x32xf32>
    %289 = arith.mulf %287, %244 : vector<8x32xf32>
    %290 = arith.mulf %286, %285 : vector<8x32xf32>
    %291 = arith.addf %289, %290 : vector<8x32xf32>
    %292 = math.tanh %291 : vector<8x32xf32>
    %293 = arith.mulf %288, %292 : vector<8x32xf32>
    %cst_70 = arith.constant dense<0.000000e+00> : vector<8x128xf32>
    %294 = tpu.matmul %271, %1, %cst_70 {dimension_numbers = #tpu.dot_dimension_numbers<[1], [0], [0], [1], [0, 0, 1, 1], [], []>} : vector<8x32xbf16>, vector<32x128xbf16>, vector<8x128xf32> -> vector<8x128xf32>
    %295 = vector.broadcast %5 : vector<1x128xf32> to vector<8x128xf32>
    %296 = arith.addf %294, %295 : vector<8x128xf32>
    %297 = arith.truncf %270 : vector<8x32xf32> to vector<8x32xbf16>
    %cst_71 = arith.constant dense<0.000000e+00> : vector<8x128xf32>
    %298 = tpu.matmul %297, %3, %cst_71 {dimension_numbers = #tpu.dot_dimension_numbers<[1], [0], [0], [1], [0, 0, 1, 1], [], []>} : vector<8x32xbf16>, vector<32x128xbf16>, vector<8x128xf32> -> vector<8x128xf32>
    %299 = arith.addf %296, %298 : vector<8x128xf32>
    %300 = vector.extract_strided_slice %299 {offsets = [0, 0], sizes = [8, 96], strides = [1, 1]} : vector<8x128xf32> to vector<8x96xf32>
    %cst_72 = arith.constant 5.000000e-01 : f32
    %301 = vector.broadcast %cst_72 : f32 to vector<8x96xf32>
    %302 = arith.mulf %301, %300 : vector<8x96xf32>
    %303 = math.tanh %302 : vector<8x96xf32>
    %cst_73 = arith.constant 5.000000e-01 : f32
    %304 = vector.broadcast %cst_73 : f32 to vector<8x96xf32>
    %305 = arith.mulf %304, %303 : vector<8x96xf32>
    %cst_74 = arith.constant 5.000000e-01 : f32
    %306 = vector.broadcast %cst_74 : f32 to vector<8x96xf32>
    %307 = arith.addf %305, %306 : vector<8x96xf32>
    %308 = vector.extract_strided_slice %299 {offsets = [0, 96], sizes = [8, 32], strides = [1, 1]} : vector<8x128xf32> to vector<8x32xf32>
    %309 = math.tanh %308 : vector<8x32xf32>
    %310 = vector.extract_strided_slice %307 {offsets = [0, 0], sizes = [8, 32], strides = [1, 1]} : vector<8x96xf32> to vector<8x32xf32>
    %311 = vector.extract_strided_slice %307 {offsets = [0, 32], sizes = [8, 32], strides = [1, 1]} : vector<8x96xf32> to vector<8x32xf32>
    %312 = vector.extract_strided_slice %307 {offsets = [0, 64], sizes = [8, 32], strides = [1, 1]} : vector<8x96xf32> to vector<8x32xf32>
    %313 = arith.mulf %311, %268 : vector<8x32xf32>
    %314 = arith.mulf %310, %309 : vector<8x32xf32>
    %315 = arith.addf %313, %314 : vector<8x32xf32>
    %316 = math.tanh %315 : vector<8x32xf32>
    %317 = arith.mulf %312, %316 : vector<8x32xf32>
    %318 = arith.truncf %293 : vector<8x32xf32> to vector<8x32xbf16>
    %319 = vector.extract_strided_slice %9 {offsets = [56, 0], sizes = [8, 128], strides = [1, 1]} : vector<64x128xf32> to vector<8x128xf32>
    %320 = arith.truncf %293 : vector<8x32xf32> to vector<8x32xbf16>
    %cst_75 = arith.constant dense<0.000000e+00> : vector<8x128xf32>
    %321 = tpu.matmul %320, %2, %cst_75 {dimension_numbers = #tpu.dot_dimension_numbers<[1], [0], [0], [1], [0, 0, 1, 1], [], []>} : vector<8x32xbf16>, vector<32x128xbf16>, vector<8x128xf32> -> vector<8x128xf32>
    %322 = arith.addf %319, %321 : vector<8x128xf32>
    %323 = vector.extract_strided_slice %322 {offsets = [0, 0], sizes = [8, 96], strides = [1, 1]} : vector<8x128xf32> to vector<8x96xf32>
    %cst_76 = arith.constant 5.000000e-01 : f32
    %324 = vector.broadcast %cst_76 : f32 to vector<8x96xf32>
    %325 = arith.mulf %324, %323 : vector<8x96xf32>
    %326 = math.tanh %325 : vector<8x96xf32>
    %cst_77 = arith.constant 5.000000e-01 : f32
    %327 = vector.broadcast %cst_77 : f32 to vector<8x96xf32>
    %328 = arith.mulf %327, %326 : vector<8x96xf32>
    %cst_78 = arith.constant 5.000000e-01 : f32
    %329 = vector.broadcast %cst_78 : f32 to vector<8x96xf32>
    %330 = arith.addf %328, %329 : vector<8x96xf32>
    %331 = vector.extract_strided_slice %322 {offsets = [0, 96], sizes = [8, 32], strides = [1, 1]} : vector<8x128xf32> to vector<8x32xf32>
    %332 = math.tanh %331 : vector<8x32xf32>
    %333 = vector.extract_strided_slice %330 {offsets = [0, 0], sizes = [8, 32], strides = [1, 1]} : vector<8x96xf32> to vector<8x32xf32>
    %334 = vector.extract_strided_slice %330 {offsets = [0, 32], sizes = [8, 32], strides = [1, 1]} : vector<8x96xf32> to vector<8x32xf32>
    %335 = vector.extract_strided_slice %330 {offsets = [0, 64], sizes = [8, 32], strides = [1, 1]} : vector<8x96xf32> to vector<8x32xf32>
    %336 = arith.mulf %334, %291 : vector<8x32xf32>
    %337 = arith.mulf %333, %332 : vector<8x32xf32>
    %338 = arith.addf %336, %337 : vector<8x32xf32>
    %339 = math.tanh %338 : vector<8x32xf32>
    %340 = arith.mulf %335, %339 : vector<8x32xf32>
    %cst_79 = arith.constant dense<0.000000e+00> : vector<8x128xf32>
    %341 = tpu.matmul %318, %1, %cst_79 {dimension_numbers = #tpu.dot_dimension_numbers<[1], [0], [0], [1], [0, 0, 1, 1], [], []>} : vector<8x32xbf16>, vector<32x128xbf16>, vector<8x128xf32> -> vector<8x128xf32>
    %342 = vector.broadcast %5 : vector<1x128xf32> to vector<8x128xf32>
    %343 = arith.addf %341, %342 : vector<8x128xf32>
    %344 = arith.truncf %317 : vector<8x32xf32> to vector<8x32xbf16>
    %cst_80 = arith.constant dense<0.000000e+00> : vector<8x128xf32>
    %345 = tpu.matmul %344, %3, %cst_80 {dimension_numbers = #tpu.dot_dimension_numbers<[1], [0], [0], [1], [0, 0, 1, 1], [], []>} : vector<8x32xbf16>, vector<32x128xbf16>, vector<8x128xf32> -> vector<8x128xf32>
    %346 = arith.addf %343, %345 : vector<8x128xf32>
    %347 = vector.extract_strided_slice %346 {offsets = [0, 0], sizes = [8, 96], strides = [1, 1]} : vector<8x128xf32> to vector<8x96xf32>
    %cst_81 = arith.constant 5.000000e-01 : f32
    %348 = vector.broadcast %cst_81 : f32 to vector<8x96xf32>
    %349 = arith.mulf %348, %347 : vector<8x96xf32>
    %350 = math.tanh %349 : vector<8x96xf32>
    %cst_82 = arith.constant 5.000000e-01 : f32
    %351 = vector.broadcast %cst_82 : f32 to vector<8x96xf32>
    %352 = arith.mulf %351, %350 : vector<8x96xf32>
    %cst_83 = arith.constant 5.000000e-01 : f32
    %353 = vector.broadcast %cst_83 : f32 to vector<8x96xf32>
    %354 = arith.addf %352, %353 : vector<8x96xf32>
    %355 = vector.extract_strided_slice %346 {offsets = [0, 96], sizes = [8, 32], strides = [1, 1]} : vector<8x128xf32> to vector<8x32xf32>
    %356 = math.tanh %355 : vector<8x32xf32>
    %357 = vector.extract_strided_slice %354 {offsets = [0, 0], sizes = [8, 32], strides = [1, 1]} : vector<8x96xf32> to vector<8x32xf32>
    %358 = vector.extract_strided_slice %354 {offsets = [0, 32], sizes = [8, 32], strides = [1, 1]} : vector<8x96xf32> to vector<8x32xf32>
    %359 = vector.extract_strided_slice %354 {offsets = [0, 64], sizes = [8, 32], strides = [1, 1]} : vector<8x96xf32> to vector<8x32xf32>
    %360 = arith.mulf %358, %315 : vector<8x32xf32>
    %361 = arith.mulf %357, %356 : vector<8x32xf32>
    %362 = arith.addf %360, %361 : vector<8x32xf32>
    %363 = math.tanh %362 : vector<8x32xf32>
    %364 = arith.mulf %359, %363 : vector<8x32xf32>
    %365 = arith.truncf %340 : vector<8x32xf32> to vector<8x32xbf16>
    %cst_84 = arith.constant dense<0.000000e+00> : vector<8x128xf32>
    %366 = tpu.matmul %365, %1, %cst_84 {dimension_numbers = #tpu.dot_dimension_numbers<[1], [0], [0], [1], [0, 0, 1, 1], [], []>} : vector<8x32xbf16>, vector<32x128xbf16>, vector<8x128xf32> -> vector<8x128xf32>
    %367 = vector.broadcast %5 : vector<1x128xf32> to vector<8x128xf32>
    %368 = arith.addf %366, %367 : vector<8x128xf32>
    %369 = arith.truncf %364 : vector<8x32xf32> to vector<8x32xbf16>
    %cst_85 = arith.constant dense<0.000000e+00> : vector<8x128xf32>
    %370 = tpu.matmul %369, %3, %cst_85 {dimension_numbers = #tpu.dot_dimension_numbers<[1], [0], [0], [1], [0, 0, 1, 1], [], []>} : vector<8x32xbf16>, vector<32x128xbf16>, vector<8x128xf32> -> vector<8x128xf32>
    %371 = arith.addf %368, %370 : vector<8x128xf32>
    %372 = vector.extract_strided_slice %371 {offsets = [0, 0], sizes = [8, 96], strides = [1, 1]} : vector<8x128xf32> to vector<8x96xf32>
    %cst_86 = arith.constant 5.000000e-01 : f32
    %373 = vector.broadcast %cst_86 : f32 to vector<8x96xf32>
    %374 = arith.mulf %373, %372 : vector<8x96xf32>
    %375 = math.tanh %374 : vector<8x96xf32>
    %cst_87 = arith.constant 5.000000e-01 : f32
    %376 = vector.broadcast %cst_87 : f32 to vector<8x96xf32>
    %377 = arith.mulf %376, %375 : vector<8x96xf32>
    %cst_88 = arith.constant 5.000000e-01 : f32
    %378 = vector.broadcast %cst_88 : f32 to vector<8x96xf32>
    %379 = arith.addf %377, %378 : vector<8x96xf32>
    %380 = vector.extract_strided_slice %371 {offsets = [0, 96], sizes = [8, 32], strides = [1, 1]} : vector<8x128xf32> to vector<8x32xf32>
    %381 = math.tanh %380 : vector<8x32xf32>
    %382 = vector.extract_strided_slice %379 {offsets = [0, 0], sizes = [8, 32], strides = [1, 1]} : vector<8x96xf32> to vector<8x32xf32>
    %383 = vector.extract_strided_slice %379 {offsets = [0, 32], sizes = [8, 32], strides = [1, 1]} : vector<8x96xf32> to vector<8x32xf32>
    %384 = vector.extract_strided_slice %379 {offsets = [0, 64], sizes = [8, 32], strides = [1, 1]} : vector<8x96xf32> to vector<8x32xf32>
    %385 = arith.mulf %383, %362 : vector<8x32xf32>
    %386 = arith.mulf %382, %381 : vector<8x32xf32>
    %387 = arith.addf %385, %386 : vector<8x32xf32>
    %388 = math.tanh %387 : vector<8x32xf32>
    %389 = arith.mulf %384, %388 : vector<8x32xf32>
    %390 = arith.truncf %389 : vector<8x32xf32> to vector<8x32xbf16>
    %c0_89 = arith.constant 0 : index
    %c0_90 = arith.constant 0 : index
    %391 = vector.load %arg7[%c0_89, %c0_90] : memref<32x128xbf16, #tpu.memory_space<vmem>>, vector<32x128xbf16>
    %cst_91 = arith.constant dense<0.000000e+00> : vector<8x128xf32>
    %392 = tpu.matmul %390, %391, %cst_91 {dimension_numbers = #tpu.dot_dimension_numbers<[1], [0], [0], [1], [0, 0, 1, 1], [], []>} : vector<8x32xbf16>, vector<32x128xbf16>, vector<8x128xf32> -> vector<8x128xf32>
    %c0_92 = arith.constant 0 : index
    %c0_93 = arith.constant 0 : index
    %393 = vector.load %arg8[%c0_92, %c0_93] : memref<1x128xf32, #tpu.memory_space<vmem>>, vector<1x128xf32>
    %394 = vector.broadcast %393 : vector<1x128xf32> to vector<8x128xf32>
    %395 = arith.addf %392, %394 : vector<8x128xf32>
    %cst_94 = arith.constant dense<0xFF800000> : vector<8xf32>
    %396 = vector.multi_reduction <maximumf>, %395, %cst_94 [1] : vector<8x128xf32> to vector<8xf32>
    %397 = vector.shape_cast %396 : vector<8xf32> to vector<8x1xf32>
    %398 = vector.broadcast %397 : vector<8x1xf32> to vector<8x128xf32>
    %399 = arith.subf %395, %398 : vector<8x128xf32>
    %400 = math.exp %399 : vector<8x128xf32>
    %cst_95 = arith.constant dense<0.000000e+00> : vector<8xf32>
    %401 = vector.multi_reduction <add>, %400, %cst_95 [1] : vector<8x128xf32> to vector<8xf32>
    %402 = vector.shape_cast %401 : vector<8xf32> to vector<8x1xf32>
    %403 = math.log %402 : vector<8x1xf32>
    %404 = vector.broadcast %403 : vector<8x1xf32> to vector<8x128xf32>
    %405 = arith.subf %399, %404 : vector<8x128xf32>
    %c0_96 = arith.constant 0 : index
    %c0_97 = arith.constant 0 : index
    %406 = vector.load %arg9[%c0_96, %c0_97] : memref<8x128xf32, #tpu.memory_space<vmem>>, vector<8x128xf32>
    tpu.vector_store %arg9[%c0_96, %c0_97], %405 {strides = array<i32>} : memref<8x128xf32, #tpu.memory_space<vmem>>, vector<8x128xf32>,
    return
  }
}

</mosaic_0001>

<llo_original>
// kernel: rnn_forward.1
$region0: #{rnn_forward.1}
  #allocation0 [shape = 'u32[]', space=smem, size = 0x4, offset = 0x4, fixed_abs, tag = 'smem constant byte address 0x4 - core index']
  #allocation1 [shape = 'u32[144,128]{1,0:T(1,128)}', space=vmem, size = 0x12000, scoped, tag = 'internal scratch']
  %s0 = inlined_call_operand.vmem [shape: bf16[64,16], index: 0, kind: input, shape index: {}]
  %s1 = inlined_call_operand.vmem [shape: bf16[16,128], index: 1, kind: input, shape index: {}]
  %s2 = inlined_call_operand.vmem [shape: bf16[32,128], index: 2, kind: input, shape index: {}]
  %s3 = inlined_call_operand.vmem [shape: f32[1,128], index: 3, kind: input, shape index: {}]
  %s4 = inlined_call_operand.vmem [shape: bf16[32,128], index: 4, kind: input, shape index: {}]
  %s5 = inlined_call_operand.vmem [shape: bf16[32,128], index: 5, kind: input, shape index: {}]
  %s6 = inlined_call_operand.vmem [shape: f32[1,128], index: 6, kind: input, shape index: {}]
  %s7 = inlined_call_operand.vmem [shape: bf16[32,128], index: 7, kind: input, shape index: {}]
  %s8 = inlined_call_operand.vmem [shape: f32[1,128], index: 8, kind: input, shape index: {}]
  %s9 = inlined_call_operand.vmem [shape: f32[8,128], index: 9, kind: output, shape index: {}]
  %s10 = sld [smem:[#allocation0]]
  $region46: #{rnn_forward.1} parent=0
    _
  %s12 = ssub.s32 1, %s10
  %s13 = scalar_select 0, %s12, %s10
  // Predicated region
  $region2: #{rnn_forward.1} parent=0 // pred_check
    _
  $region3: #{rnn_forward.1} parent=0 // pred_check_branch
    %15 = sbr.rel (0) target = $region5
  $region4: #{rnn_forward.1} parent=0 // pred_region
    _
  $region5: #{rnn_forward.1} parent=0 // pred_fallthru
    _
  // Predicated region
  $region6: #{rnn_forward.1} parent=0 // pred_check
    _
  $region7: #{rnn_forward.1} parent=0 // pred_check_branch
    %17 = sbr.rel (0) target = $region9
  $region8: #{rnn_forward.1} parent=0 // pred_region
    _
  $region9: #{rnn_forward.1} parent=0 // pred_fallthru
    _
  // Predicated region
  $region10: #{rnn_forward.1} parent=0 // pred_check
    _
  $region11: #{rnn_forward.1} parent=0 // pred_check_branch
    %19 = sbr.rel (0) target = $region13
  $region12: #{rnn_forward.1} parent=0 // pred_region
    _
  $region13: #{rnn_forward.1} parent=0 // pred_fallthru
    _
  // Predicated region
  $region14: #{rnn_forward.1} parent=0 // pred_check
    _
  $region15: #{rnn_forward.1} parent=0 // pred_check_branch
    %21 = sbr.rel (0) target = $region17
  $region16: #{rnn_forward.1} parent=0 // pred_region
    _
  $region17: #{rnn_forward.1} parent=0 // pred_fallthru
    _
  // Predicated region
  $region18: #{rnn_forward.1} parent=0 // pred_check
    _
  $region19: #{rnn_forward.1} parent=0 // pred_check_branch
    %23 = sbr.rel (0) target = $region21
  $region20: #{rnn_forward.1} parent=0 // pred_region
    _
  $region21: #{rnn_forward.1} parent=0 // pred_fallthru
    _
  // Predicated region
  $region22: #{rnn_forward.1} parent=0 // pred_check
    _
  $region23: #{rnn_forward.1} parent=0 // pred_check_branch
    %25 = sbr.rel (0) target = $region25
  $region24: #{rnn_forward.1} parent=0 // pred_region
    _
  $region25: #{rnn_forward.1} parent=0 // pred_fallthru
    _
  // Predicated region
  $region26: #{rnn_forward.1} parent=0 // pred_check
    _
  $region27: #{rnn_forward.1} parent=0 // pred_check_branch
    %27 = sbr.rel (0) target = $region29
  $region28: #{rnn_forward.1} parent=0 // pred_region
    _
  $region29: #{rnn_forward.1} parent=0 // pred_fallthru
    _
  // Predicated region
  $region30: #{rnn_forward.1} parent=0 // pred_check
    _
  $region31: #{rnn_forward.1} parent=0 // pred_check_branch
    %29 = sbr.rel (0) target = $region33
  $region32: #{rnn_forward.1} parent=0 // pred_region
    _
  $region33: #{rnn_forward.1} parent=0 // pred_fallthru
    _
  // Predicated region
  $region34: #{rnn_forward.1} parent=0 // pred_check
    _
  $region35: #{rnn_forward.1} parent=0 // pred_check_branch
    %31 = sbr.rel (0) target = $region37
  $region36: #{rnn_forward.1} parent=0 // pred_region
    _
  $region37: #{rnn_forward.1} parent=0 // pred_fallthru
    _
  %v33 = vld [vmem:[%s1] sm:$0xf]
  %v34 = vld [vmem:[%s1 + $0x4] sm:$0xf]
  %v35 = vld [vmem:[%s4] sm:$0xf]
  %v36 = vld [vmem:[%s4 + $0x4] sm:$0xf]
  %v37 = vld [vmem:[%s4 + $0x8] sm:$0xf]
  %v38 = vld [vmem:[%s4 + $0xc] sm:$0xf]
  %v39 = vld [vmem:[%s2] sm:$0xf]
  %v40 = vld [vmem:[%s2 + $0x4] sm:$0xf]
  %v41 = vld [vmem:[%s2 + $0x8] sm:$0xf]
  %v42 = vld [vmem:[%s2 + $0xc] sm:$0xf]
  %v43 = vld [vmem:[%s5] sm:$0xf]
  %v44 = vld [vmem:[%s5 + $0x4] sm:$0xf]
  %v45 = vld [vmem:[%s5 + $0x8] sm:$0xf]
  %v46 = vld [vmem:[%s5 + $0xc] sm:$0xf]
  %v47 = vld [vmem:[%s3] sm:$0x1]
  %v48 = vld [vmem:[%s6] sm:$0x1]
  %v49 = vld [vmem:[%s0] sm:$0xf]
  %v50 = vld [vmem:[%s0 + $0x4] sm:$0xf]
  %v51 = vld [vmem:[%s0 + $0x8] sm:$0xf]
  %v52 = vld [vmem:[%s0 + $0xc] sm:$0xf]
  %v53 = vld [vmem:[%s0 + $0x10] sm:$0xf]
  %v54 = vld [vmem:[%s0 + $0x14] sm:$0xf]
  %v55 = vld [vmem:[%s0 + $0x18] sm:$0xf]
  %v56 = vld [vmem:[%s0 + $0x1c] sm:$0xf]
  %v58 = vlaneseq
  %v59 = vshrl.u32 %v58, 7
  %v60 = vsub.s32 0, %v59
  %v61 = vrot.slane %v47, %v60
  %v71 = vunpack.c.l.b16 %v49
  %v72 = vunpack.c.l.b16 %v50
  %v73 = vunpack.c.l.b16 %v51
  %v74 = vunpack.c.l.b16 %v52
  %v75 = vunpack.c.l.b16 %v53
  %v76 = vunpack.c.l.b16 %v54
  %v77 = vunpack.c.l.b16 %v55
  %v78 = vunpack.c.l.b16 %v56
  %v79 = vpack.c.b16 %v72, %v71
  %v80 = vpack.c.b16 %v74, %v73
  %v81 = vpack.c.b16 %v76, %v75
  %v82 = vpack.c.b16 %v78, %v77
  %v85 = vunpack.c.l.b16 %v33
  %v86 = vunpack.c.l.b16 %v34
  %v87 = vpack.c.b16 %v86, %v85
  %vm89 = vcmask 130048
  %v91 = vsel %vm89, %v79, 0
  %v94 = vsel %vm89, %v80, 0
  %v97 = vsel %vm89, %v81, 0
  %v100 = vsel %vm89, %v82, 0
  %102 = vmatprep.subr.bf16.mxu0 0
  %103 = vmatpush1.bf16.msra.mxu0 %v87
  %104 = vmatprep.subr.bf16.mxu0 0
  %105 = vmatpush1.bf16.msra.mxu0 0
  %106 = vmatprep.subr.bf16.mxu0 0
  %107 = vmatpush1.bf16.msra.mxu0 0
  %108 = vmatprep.subr.bf16.mxu0 0
  %109 = vmatpush1.bf16.msra.mxu0 0
  %110 = vmatprep.subr.bf16.mxu0 0
  %111 = vmatpush1.bf16.msra.mxu0 0
  %112 = vmatprep.subr.bf16.mxu0 0
  %113 = vmatpush1.bf16.msra.mxu0 0
  %114 = vmatprep.subr.bf16.mxu0 0
  %115 = vmatpush1.bf16.msra.mxu0 0
  %116 = vmatprep.subr.bf16.mxu0 0
  %117 = vmatpush1.bf16.msra.mxu0 0
  %118 = vmatprep.subr.bf16.mxu0 0
  %119 = vmatpush1.bf16.msra.mxu0 0
  %120 = vmatprep.subr.bf16.mxu0 0
  %121 = vmatpush1.bf16.msra.mxu0 0
  %122 = vmatprep.subr.bf16.mxu0 0
  %123 = vmatpush1.bf16.msra.mxu0 0
  %124 = vmatprep.subr.bf16.mxu0 0
  %125 = vmatpush1.bf16.msra.mxu0 0
  %126 = vmatprep.subr.bf16.mxu0 0
  %127 = vmatpush1.bf16.msra.mxu0 0
  %128 = vmatprep.subr.bf16.mxu0 0
  %129 = vmatpush1.bf16.msra.mxu0 0
  %130 = vmatprep.subr.bf16.mxu0 0
  %131 = vmatpush1.bf16.msra.mxu0 0
  %132 = vmatprep.subr.bf16.mxu0 0
  %133 = vmatpush1.bf16.msra.mxu0 0
  %134 = vmatprep.mubr.bf16.mxu0 0
  %135 = vmatmul.mubr.bf16.gmra.mrb[0].mxu0 %v91
  %v136 = vpop.f32.mrb[0].mxu0
  %v137 = vadd.f32 %v61, %v136
  %v138 = vpop.f32.mrb[0].mxu0
  %v139 = vpop.f32.mrb[0].mxu0
  %v140 = vadd.f32 %v61, %v139
  %v141 = vpop.f32.mrb[0].mxu0
  %142 = vmatprep.mubr.bf16.mxu0 0
  %143 = vmatmul.mubr.bf16.gmra.mrb[0].mxu0 %v94
  %v144 = vpop.f32.mrb[0].mxu0
  %v145 = vadd.f32 %v61, %v144
  %v146 = vpop.f32.mrb[0].mxu0
  %v147 = vpop.f32.mrb[0].mxu0
  %v148 = vadd.f32 %v61, %v147
  %v149 = vpop.f32.mrb[0].mxu0
  %150 = vmatprep.mubr.bf16.mxu0 0
  %151 = vmatmul.mubr.bf16.gmra.mrb[0].mxu0 %v97
  %v152 = vpop.f32.mrb[0].mxu0
  %v153 = vadd.f32 %v61, %v152
  %v154 = vpop.f32.mrb[0].mxu0
  %v155 = vpop.f32.mrb[0].mxu0
  %v156 = vadd.f32 %v61, %v155
  %v157 = vpop.f32.mrb[0].mxu0
  %158 = vmatprep.mubr.bf16.mxu0 0
  %159 = vmatmul.mubr.bf16.gmra.mrb[0].mxu0 %v100
  %v160 = vpop.f32.mrb[0].mxu0
  %v161 = vadd.f32 %v61, %v160
  %v162 = vpop.f32.mrb[0].mxu0
  %v163 = vpop.f32.mrb[0].mxu0
  %v164 = vadd.f32 %v61, %v163
  %v165 = vpop.f32.mrb[0].mxu0
  %166 = vdwg.mxu0
  %v171 = vunpack.c.l.b16 %v39
  %v172 = vunpack.c.l.b16 %v40
  %v173 = vunpack.c.l.b16 %v41
  %v174 = vunpack.c.l.b16 %v42
  %v175 = vpack.c.b16 %v172, %v171
  %v176 = vpack.c.b16 %v174, %v173
  %vm179 = vcmask 261120
  %v181 = vsel %vm179, 0, 0
  %183 = vmatprep.subr.bf16.mxu0 0
  %184 = vmatpush1.bf16.msra.mxu0 %v175
  %185 = vmatprep.subr.bf16.mxu0 0
  %186 = vmatpush1.bf16.msra.mxu0 %v176
  %187 = vmatprep.subr.bf16.mxu0 0
  %188 = vmatpush1.bf16.msra.mxu0 0
  %189 = vmatprep.subr.bf16.mxu0 0
  %190 = vmatpush1.bf16.msra.mxu0 0
  %191 = vmatprep.subr.bf16.mxu0 0
  %192 = vmatpush1.bf16.msra.mxu0 0
  %193 = vmatprep.subr.bf16.mxu0 0
  %194 = vmatpush1.bf16.msra.mxu0 0
  %195 = vmatprep.subr.bf16.mxu0 0
  %196 = vmatpush1.bf16.msra.mxu0 0
  %197 = vmatprep.subr.bf16.mxu0 0
  %198 = vmatpush1.bf16.msra.mxu0 0
  %199 = vmatprep.subr.bf16.mxu0 0
  %200 = vmatpush1.bf16.msra.mxu0 0
  %201 = vmatprep.subr.bf16.mxu0 0
  %202 = vmatpush1.bf16.msra.mxu0 0
  %203 = vmatprep.subr.bf16.mxu0 0
  %204 = vmatpush1.bf16.msra.mxu0 0
  %205 = vmatprep.subr.bf16.mxu0 0
  %206 = vmatpush1.bf16.msra.mxu0 0
  %207 = vmatprep.subr.bf16.mxu0 0
  %208 = vmatpush1.bf16.msra.mxu0 0
  %209 = vmatprep.subr.bf16.mxu0 0
  %210 = vmatpush1.bf16.msra.mxu0 0
  %211 = vmatprep.subr.bf16.mxu0 0
  %212 = vmatpush1.bf16.msra.mxu0 0
  %213 = vmatprep.subr.bf16.mxu0 0
  %214 = vmatpush1.bf16.msra.mxu0 0
  %215 = vmatprep.mubr.bf16.mxu0 0
  %216 = vmatmul.mubr.bf16.gmra.mrb[0].mxu0 %v181
  %v217 = vpop.f32.mrb[0].mxu0
  %v218 = vadd.f32 0.0, %v217
  %v219 = vpop.f32.mrb[0].mxu0
  %v220 = vpop.f32.mrb[0].mxu0
  %v221 = vpop.f32.mrb[0].mxu0
  %222 = vdwg.mxu0
  %v223 = vadd.f32 %v137, %v218
  %v224 = vmul.f32 %v223, 0.5
  %v225 = vtanh.pop %v224
  %v226 = vmul.f32 %v225, 0.5
  %v227 = vadd.f32 %v226, 0.5
  %v228 = vtanh.pop %v223
  %v229 = vmul.f32 %v227, 0.0
  %231 = vrot.lane.b32.xlu0 %v228, 32
  %v232 = vpop.permute.xlu0 %231
  %v234 = vmul.f32 %v227, %v232
  %236 = vrot.lane.b32.xlu0 %v234, 32
  %v237 = vpop.permute.xlu0 %236
  %v239 = vadd.f32 %v229, %v237
  %v240 = vtanh.pop %v239
  %242 = vrot.lane.b32.xlu0 %v240, 32
  %v243 = vpop.permute.xlu0 %242
  %v245 = vmul.f32 %v227, %v243
  %v246 = vpack.c.bf16 %v245, %v245
  %248 = vrot.lane.b32.xlu0 %v246, 64
  %v249 = vpop.permute.xlu0 %248
  %v251 = vsel %vm179, %v249, 0
  %253 = vmatprep.subr.bf16.mxu0 0
  %254 = vmatpush1.bf16.msra.mxu0 %v175
  %255 = vmatprep.subr.bf16.mxu0 0
  %256 = vmatpush1.bf16.msra.mxu0 %v176
  %257 = vmatprep.subr.bf16.mxu0 0
  %258 = vmatpush1.bf16.msra.mxu0 0
  %259 = vmatprep.subr.bf16.mxu0 0
  %260 = vmatpush1.bf16.msra.mxu0 0
  %261 = vmatprep.subr.bf16.mxu0 0
  %262 = vmatpush1.bf16.msra.mxu0 0
  %263 = vmatprep.subr.bf16.mxu0 0
  %264 = vmatpush1.bf16.msra.mxu0 0
  %265 = vmatprep.subr.bf16.mxu0 0
  %266 = vmatpush1.bf16.msra.mxu0 0
  %267 = vmatprep.subr.bf16.mxu0 0
  %268 = vmatpush1.bf16.msra.mxu0 0
  %269 = vmatprep.subr.bf16.mxu0 0
  %270 = vmatpush1.bf16.msra.mxu0 0
  %271 = vmatprep.subr.bf16.mxu0 0
  %272 = vmatpush1.bf16.msra.mxu0 0
  %273 = vmatprep.subr.bf16.mxu0 0
  %274 = vmatpush1.bf16.msra.mxu0 0
  %275 = vmatprep.subr.bf16.mxu0 0
  %276 = vmatpush1.bf16.msra.mxu0 0
  %277 = vmatprep.subr.bf16.mxu0 0
  %278 = vmatpush1.bf16.msra.mxu0 0
  %279 = vmatprep.subr.bf16.mxu0 0
  %280 = vmatpush1.bf16.msra.mxu0 0
  %281 = vmatprep.subr.bf16.mxu0 0
  %282 = vmatpush1.bf16.msra.mxu0 0
  %283 = vmatprep.subr.bf16.mxu0 0
  %284 = vmatpush1.bf16.msra.mxu0 0
  %285 = vmatprep.mubr.bf16.mxu0 0
  %286 = vmatmul.mubr.bf16.gmra.mrb[0].mxu0 %v251
  %v287 = vpop.f32.mrb[0].mxu0
  %v288 = vadd.f32 0.0, %v287
  %v289 = vpop.f32.mrb[0].mxu0
  %v290 = vpop.f32.mrb[0].mxu0
  %v291 = vpop.f32.mrb[0].mxu0
  %292 = vdwg.mxu0
  %v293 = vadd.f32 %v140, %v288
  %v294 = vmul.f32 %v293, 0.5
  %v295 = vtanh.pop %v294
  %v296 = vmul.f32 %v295, 0.5
  %v297 = vadd.f32 %v296, 0.5
  %v298 = vtanh.pop %v293
  %v299 = vmul.f32 %v297, %v239
  %301 = vrot.lane.b32.xlu0 %v298, 32
  %v302 = vpop.permute.xlu0 %301
  %v304 = vmul.f32 %v297, %v302
  %306 = vrot.lane.b32.xlu0 %v304, 32
  %v307 = vpop.permute.xlu0 %306
  %v309 = vadd.f32 %v299, %v307
  %v310 = vtanh.pop %v309
  %312 = vrot.lane.b32.xlu0 %v310, 32
  %v313 = vpop.permute.xlu0 %312
  %v315 = vmul.f32 %v297, %v313
  %v317 = vlaneseq
  %v318 = vshrl.u32 %v317, 7
  %v319 = vsub.s32 0, %v318
  %v320 = vrot.slane %v48, %v319
  %v326 = vunpack.c.l.b16 %v35
  %v327 = vunpack.c.l.b16 %v36
  %v328 = vunpack.c.l.b16 %v37
  %v329 = vunpack.c.l.b16 %v38
  %v330 = vpack.c.b16 %v327, %v326
  %v331 = vpack.c.b16 %v329, %v328
  %334 = vmatprep.subr.bf16.mxu0 0
  %335 = vmatpush1.bf16.msra.mxu0 %v330
  %336 = vmatprep.subr.bf16.mxu0 0
  %337 = vmatpush1.bf16.msra.mxu0 %v331
  %338 = vmatprep.subr.bf16.mxu0 0
  %339 = vmatpush1.bf16.msra.mxu0 0
  %340 = vmatprep.subr.bf16.mxu0 0
  %341 = vmatpush1.bf16.msra.mxu0 0
  %342 = vmatprep.subr.bf16.mxu0 0
  %343 = vmatpush1.bf16.msra.mxu0 0
  %344 = vmatprep.subr.bf16.mxu0 0
  %345 = vmatpush1.bf16.msra.mxu0 0
  %346 = vmatprep.subr.bf16.mxu0 0
  %347 = vmatpush1.bf16.msra.mxu0 0
  %348 = vmatprep.subr.bf16.mxu0 0
  %349 = vmatpush1.bf16.msra.mxu0 0
  %350 = vmatprep.subr.bf16.mxu0 0
  %351 = vmatpush1.bf16.msra.mxu0 0
  %352 = vmatprep.subr.bf16.mxu0 0
  %353 = vmatpush1.bf16.msra.mxu0 0
  %354 = vmatprep.subr.bf16.mxu0 0
  %355 = vmatpush1.bf16.msra.mxu0 0
  %356 = vmatprep.subr.bf16.mxu0 0
  %357 = vmatpush1.bf16.msra.mxu0 0
  %358 = vmatprep.subr.bf16.mxu0 0
  %359 = vmatpush1.bf16.msra.mxu0 0
  %360 = vmatprep.subr.bf16.mxu0 0
  %361 = vmatpush1.bf16.msra.mxu0 0
  %362 = vmatprep.subr.bf16.mxu0 0
  %363 = vmatpush1.bf16.msra.mxu0 0
  %364 = vmatprep.subr.bf16.mxu0 0
  %365 = vmatpush1.bf16.msra.mxu0 0
  %366 = vmatprep.mubr.bf16.mxu0 0
  %367 = vmatmul.mubr.bf16.gmra.mrb[0].mxu0 %v251
  %v368 = vpop.f32.mrb[0].mxu0
  %v369 = vadd.f32 %v320, %v368
  %v370 = vpop.f32.mrb[0].mxu0
  %v371 = vpop.f32.mrb[0].mxu0
  %v372 = vpop.f32.mrb[0].mxu0
  %373 = vdwg.mxu0
  %v378 = vunpack.c.l.b16 %v43
  %v379 = vunpack.c.l.b16 %v44
  %v380 = vunpack.c.l.b16 %v45
  %v381 = vunpack.c.l.b16 %v46
  %v382 = vpack.c.b16 %v379, %v378
  %v383 = vpack.c.b16 %v381, %v380
  %386 = vmatprep.subr.bf16.mxu0 0
  %387 = vmatpush1.bf16.msra.mxu0 %v382
  %388 = vmatprep.subr.bf16.mxu0 0
  %389 = vmatpush1.bf16.msra.mxu0 %v383
  %390 = vmatprep.subr.bf16.mxu0 0
  %391 = vmatpush1.bf16.msra.mxu0 0
  %392 = vmatprep.subr.bf16.mxu0 0
  %393 = vmatpush1.bf16.msra.mxu0 0
  %394 = vmatprep.subr.bf16.mxu0 0
  %395 = vmatpush1.bf16.msra.mxu0 0
  %396 = vmatprep.subr.bf16.mxu0 0
  %397 = vmatpush1.bf16.msra.mxu0 0
  %398 = vmatprep.subr.bf16.mxu0 0
  %399 = vmatpush1.bf16.msra.mxu0 0
  %400 = vmatprep.subr.bf16.mxu0 0
  %401 = vmatpush1.bf16.msra.mxu0 0
  %402 = vmatprep.subr.bf16.mxu0 0
  %403 = vmatpush1.bf16.msra.mxu0 0
  %404 = vmatprep.subr.bf16.mxu0 0
  %405 = vmatpush1.bf16.msra.mxu0 0
  %406 = vmatprep.subr.bf16.mxu0 0
  %407 = vmatpush1.bf16.msra.mxu0 0
  %408 = vmatprep.subr.bf16.mxu0 0
  %409 = vmatpush1.bf16.msra.mxu0 0
  %410 = vmatprep.subr.bf16.mxu0 0
  %411 = vmatpush1.bf16.msra.mxu0 0
  %412 = vmatprep.subr.bf16.mxu0 0
  %413 = vmatpush1.bf16.msra.mxu0 0
  %414 = vmatprep.subr.bf16.mxu0 0
  %415 = vmatpush1.bf16.msra.mxu0 0
  %416 = vmatprep.subr.bf16.mxu0 0
  %417 = vmatpush1.bf16.msra.mxu0 0
  %418 = vmatprep.mubr.bf16.mxu0 0
  %419 = vmatmul.mubr.bf16.gmra.mrb[0].mxu0 %v181
  %v420 = vpop.f32.mrb[0].mxu0
  %v421 = vadd.f32 0.0, %v420
  %v422 = vpop.f32.mrb[0].mxu0
  %v423 = vpop.f32.mrb[0].mxu0
  %v424 = vpop.f32.mrb[0].mxu0
  %425 = vdwg.mxu0
  %v426 = vadd.f32 %v369, %v421
  %v427 = vmul.f32 %v426, 0.5
  %v428 = vtanh.pop %v427
  %v429 = vmul.f32 %v428, 0.5
  %v430 = vadd.f32 %v429, 0.5
  %v431 = vtanh.pop %v426
  %v432 = vmul.f32 %v430, 0.0
  %434 = vrot.lane.b32.xlu0 %v431, 32
  %v435 = vpop.permute.xlu0 %434
  %v437 = vmul.f32 %v430, %v435
  %439 = vrot.lane.b32.xlu0 %v437, 32
  %v440 = vpop.permute.xlu0 %439
  %v442 = vadd.f32 %v432, %v440
  %v443 = vtanh.pop %v442
  %445 = vrot.lane.b32.xlu0 %v443, 32
  %v446 = vpop.permute.xlu0 %445
  %v448 = vmul.f32 %v430, %v446
  %v449 = vpack.c.bf16 %v315, %v315
  %451 = vrot.lane.b32.xlu0 %v449, 64
  %v452 = vpop.permute.xlu0 %451
  %v454 = vsel %vm179, %v452, 0
  %456 = vmatprep.subr.bf16.mxu0 0
  %457 = vmatpush1.bf16.msra.mxu0 %v175
  %458 = vmatprep.subr.bf16.mxu0 0
  %459 = vmatpush1.bf16.msra.mxu0 %v176
  %460 = vmatprep.subr.bf16.mxu0 0
  %461 = vmatpush1.bf16.msra.mxu0 0
  %462 = vmatprep.subr.bf16.mxu0 0
  %463 = vmatpush1.bf16.msra.mxu0 0
  %464 = vmatprep.subr.bf16.mxu0 0
  %465 = vmatpush1.bf16.msra.mxu0 0
  %466 = vmatprep.subr.bf16.mxu0 0
  %467 = vmatpush1.bf16.msra.mxu0 0
  %468 = vmatprep.subr.bf16.mxu0 0
  %469 = vmatpush1.bf16.msra.mxu0 0
  %470 = vmatprep.subr.bf16.mxu0 0
  %471 = vmatpush1.bf16.msra.mxu0 0
  %472 = vmatprep.subr.bf16.mxu0 0
  %473 = vmatpush1.bf16.msra.mxu0 0
  %474 = vmatprep.subr.bf16.mxu0 0
  %475 = vmatpush1.bf16.msra.mxu0 0
  %476 = vmatprep.subr.bf16.mxu0 0
  %477 = vmatpush1.bf16.msra.mxu0 0
  %478 = vmatprep.subr.bf16.mxu0 0
  %479 = vmatpush1.bf16.msra.mxu0 0
  %480 = vmatprep.subr.bf16.mxu0 0
  %481 = vmatpush1.bf16.msra.mxu0 0
  %482 = vmatprep.subr.bf16.mxu0 0
  %483 = vmatpush1.bf16.msra.mxu0 0
  %484 = vmatprep.subr.bf16.mxu0 0
  %485 = vmatpush1.bf16.msra.mxu0 0
  %486 = vmatprep.subr.bf16.mxu0 0
  %487 = vmatpush1.bf16.msra.mxu0 0
  %488 = vmatprep.mubr.bf16.mxu0 0
  %489 = vmatmul.mubr.bf16.gmra.mrb[0].mxu0 %v454
  %v490 = vpop.f32.mrb[0].mxu0
  %v491 = vadd.f32 0.0, %v490
  %v492 = vpop.f32.mrb[0].mxu0
  %v493 = vpop.f32.mrb[0].mxu0
  %v494 = vpop.f32.mrb[0].mxu0
  %495 = vdwg.mxu0
  %v496 = vadd.f32 %v145, %v491
  %v497 = vmul.f32 %v496, 0.5
  %v498 = vtanh.pop %v497
  %v499 = vmul.f32 %v498, 0.5
  %v500 = vadd.f32 %v499, 0.5
  %v501 = vtanh.pop %v496
  %v502 = vmul.f32 %v500, %v309
  %504 = vrot.lane.b32.xlu0 %v501, 32
  %v505 = vpop.permute.xlu0 %504
  %v507 = vmul.f32 %v500, %v505
  %509 = vrot.lane.b32.xlu0 %v507, 32
  %v510 = vpop.permute.xlu0 %509
  %v512 = vadd.f32 %v502, %v510
  %v513 = vtanh.pop %v512
  %515 = vrot.lane.b32.xlu0 %v513, 32
  %v516 = vpop.permute.xlu0 %515
  %v518 = vmul.f32 %v500, %v516
  %519 = vmatprep.subr.bf16.mxu0 0
  %520 = vmatpush1.bf16.msra.mxu0 %v330
  %521 = vmatprep.subr.bf16.mxu0 0
  %522 = vmatpush1.bf16.msra.mxu0 %v331
  %523 = vmatprep.subr.bf16.mxu0 0
  %524 = vmatpush1.bf16.msra.mxu0 0
  %525 = vmatprep.subr.bf16.mxu0 0
  %526 = vmatpush1.bf16.msra.mxu0 0
  %527 = vmatprep.subr.bf16.mxu0 0
  %528 = vmatpush1.bf16.msra.mxu0 0
  %529 = vmatprep.subr.bf16.mxu0 0
  %530 = vmatpush1.bf16.msra.mxu0 0
  %531 = vmatprep.subr.bf16.mxu0 0
  %532 = vmatpush1.bf16.msra.mxu0 0
  %533 = vmatprep.subr.bf16.mxu0 0
  %534 = vmatpush1.bf16.msra.mxu0 0
  %535 = vmatprep.subr.bf16.mxu0 0
  %536 = vmatpush1.bf16.msra.mxu0 0
  %537 = vmatprep.subr.bf16.mxu0 0
  %538 = vmatpush1.bf16.msra.mxu0 0
  %539 = vmatprep.subr.bf16.mxu0 0
  %540 = vmatpush1.bf16.msra.mxu0 0
  %541 = vmatprep.subr.bf16.mxu0 0
  %542 = vmatpush1.bf16.msra.mxu0 0
  %543 = vmatprep.subr.bf16.mxu0 0
  %544 = vmatpush1.bf16.msra.mxu0 0
  %545 = vmatprep.subr.bf16.mxu0 0
  %546 = vmatpush1.bf16.msra.mxu0 0
  %547 = vmatprep.subr.bf16.mxu0 0
  %548 = vmatpush1.bf16.msra.mxu0 0
  %549 = vmatprep.subr.bf16.mxu0 0
  %550 = vmatpush1.bf16.msra.mxu0 0
  %551 = vmatprep.mubr.bf16.mxu0 0
  %552 = vmatmul.mubr.bf16.gmra.mrb[0].mxu0 %v454
  %v553 = vpop.f32.mrb[0].mxu0
  %v554 = vadd.f32 %v320, %v553
  %v555 = vpop.f32.mrb[0].mxu0
  %v556 = vpop.f32.mrb[0].mxu0
  %v557 = vpop.f32.mrb[0].mxu0
  %558 = vdwg.mxu0
  %v559 = vpack.c.bf16 %v448, %v448
  %561 = vrot.lane.b32.xlu0 %v559, 64
  %v562 = vpop.permute.xlu0 %561
  %v564 = vsel %vm179, %v562, 0
  %566 = vmatprep.subr.bf16.mxu0 0
  %567 = vmatpush1.bf16.msra.mxu0 %v382
  %568 = vmatprep.subr.bf16.mxu0 0
  %569 = vmatpush1.bf16.msra.mxu0 %v383
  %570 = vmatprep.subr.bf16.mxu0 0
  %571 = vmatpush1.bf16.msra.mxu0 0
  %572 = vmatprep.subr.bf16.mxu0 0
  %573 = vmatpush1.bf16.msra.mxu0 0
  %574 = vmatprep.subr.bf16.mxu0 0
  %575 = vmatpush1.bf16.msra.mxu0 0
  %576 = vmatprep.subr.bf16.mxu0 0
  %577 = vmatpush1.bf16.msra.mxu0 0
  %578 = vmatprep.subr.bf16.mxu0 0
  %579 = vmatpush1.bf16.msra.mxu0 0
  %580 = vmatprep.subr.bf16.mxu0 0
  %581 = vmatpush1.bf16.msra.mxu0 0
  %582 = vmatprep.subr.bf16.mxu0 0
  %583 = vmatpush1.bf16.msra.mxu0 0
  %584 = vmatprep.subr.bf16.mxu0 0
  %585 = vmatpush1.bf16.msra.mxu0 0
  %586 = vmatprep.subr.bf16.mxu0 0
  %587 = vmatpush1.bf16.msra.mxu0 0
  %588 = vmatprep.subr.bf16.mxu0 0
  %589 = vmatpush1.bf16.msra.mxu0 0
  %590 = vmatprep.subr.bf16.mxu0 0
  %591 = vmatpush1.bf16.msra.mxu0 0
  %592 = vmatprep.subr.bf16.mxu0 0
  %593 = vmatpush1.bf16.msra.mxu0 0
  %594 = vmatprep.subr.bf16.mxu0 0
  %595 = vmatpush1.bf16.msra.mxu0 0
  %596 = vmatprep.subr.bf16.mxu0 0
  %597 = vmatpush1.bf16.msra.mxu0 0
  %598 = vmatprep.mubr.bf16.mxu0 0
  %599 = vmatmul.mubr.bf16.gmra.mrb[0].mxu0 %v564
  %v600 = vpop.f32.mrb[0].mxu0
  %v601 = vadd.f32 0.0, %v600
  %v602 = vpop.f32.mrb[0].mxu0
  %v603 = vpop.f32.mrb[0].mxu0
  %v604 = vpop.f32.mrb[0].mxu0
  %605 = vdwg.mxu0
  %v606 = vadd.f32 %v554, %v601
  %v607 = vmul.f32 %v606, 0.5
  %v608 = vtanh.pop %v607
  %v609 = vmul.f32 %v608, 0.5
  %v610 = vadd.f32 %v609, 0.5
  %v611 = vtanh.pop %v606
  %v612 = vmul.f32 %v610, %v442
  %614 = vrot.lane.b32.xlu0 %v611, 32
  %v615 = vpop.permute.xlu0 %614
  %v617 = vmul.f32 %v610, %v615
  %619 = vrot.lane.b32.xlu0 %v617, 32
  %v620 = vpop.permute.xlu0 %619
  %v622 = vadd.f32 %v612, %v620
  %v623 = vtanh.pop %v622
  %625 = vrot.lane.b32.xlu0 %v623, 32
  %v626 = vpop.permute.xlu0 %625
  %v628 = vmul.f32 %v610, %v626
  %v629 = vpack.c.bf16 %v518, %v518
  %631 = vrot.lane.b32.xlu0 %v629, 64
  %v632 = vpop.permute.xlu0 %631
  %v634 = vsel %vm179, %v632, 0
  %636 = vmatprep.subr.bf16.mxu0 0
  %637 = vmatpush1.bf16.msra.mxu0 %v175
  %638 = vmatprep.subr.bf16.mxu0 0
  %639 = vmatpush1.bf16.msra.mxu0 %v176
  %640 = vmatprep.subr.bf16.mxu0 0
  %641 = vmatpush1.bf16.msra.mxu0 0
  %642 = vmatprep.subr.bf16.mxu0 0
  %643 = vmatpush1.bf16.msra.mxu0 0
  %644 = vmatprep.subr.bf16.mxu0 0
  %645 = vmatpush1.bf16.msra.mxu0 0
  %646 = vmatprep.subr.bf16.mxu0 0
  %647 = vmatpush1.bf16.msra.mxu0 0
  %648 = vmatprep.subr.bf16.mxu0 0
  %649 = vmatpush1.bf16.msra.mxu0 0
  %650 = vmatprep.subr.bf16.mxu0 0
  %651 = vmatpush1.bf16.msra.mxu0 0
  %652 = vmatprep.subr.bf16.mxu0 0
  %653 = vmatpush1.bf16.msra.mxu0 0
  %654 = vmatprep.subr.bf16.mxu0 0
  %655 = vmatpush1.bf16.msra.mxu0 0
  %656 = vmatprep.subr.bf16.mxu0 0
  %657 = vmatpush1.bf16.msra.mxu0 0
  %658 = vmatprep.subr.bf16.mxu0 0
  %659 = vmatpush1.bf16.msra.mxu0 0
  %660 = vmatprep.subr.bf16.mxu0 0
  %661 = vmatpush1.bf16.msra.mxu0 0
  %662 = vmatprep.subr.bf16.mxu0 0
  %663 = vmatpush1.bf16.msra.mxu0 0
  %664 = vmatprep.subr.bf16.mxu0 0
  %665 = vmatpush1.bf16.msra.mxu0 0
  %666 = vmatprep.subr.bf16.mxu0 0
  %667 = vmatpush1.bf16.msra.mxu0 0
  %668 = vmatprep.mubr.bf16.mxu0 0
  %669 = vmatmul.mubr.bf16.gmra.mrb[0].mxu0 %v634
  %v670 = vpop.f32.mrb[0].mxu0
  %v671 = vadd.f32 0.0, %v670
  %v672 = vpop.f32.mrb[0].mxu0
  %v673 = vpop.f32.mrb[0].mxu0
  %v674 = vpop.f32.mrb[0].mxu0
  %675 = vdwg.mxu0
  %v676 = vadd.f32 %v148, %v671
  %v677 = vmul.f32 %v676, 0.5
  %v678 = vtanh.pop %v677
  %v679 = vmul.f32 %v678, 0.5
  %v680 = vadd.f32 %v679, 0.5
  %v681 = vtanh.pop %v676
  %v682 = vmul.f32 %v680, %v512
  %684 = vrot.lane.b32.xlu0 %v681, 32
  %v685 = vpop.permute.xlu0 %684
  %v687 = vmul.f32 %v680, %v685
  %689 = vrot.lane.b32.xlu0 %v687, 32
  %v690 = vpop.permute.xlu0 %689
  %v692 = vadd.f32 %v682, %v690
  %v693 = vtanh.pop %v692
  %695 = vrot.lane.b32.xlu0 %v693, 32
  %v696 = vpop.permute.xlu0 %695
  %v698 = vmul.f32 %v680, %v696
  %699 = vmatprep.subr.bf16.mxu0 0
  %700 = vmatpush1.bf16.msra.mxu0 %v330
  %701 = vmatprep.subr.bf16.mxu0 0
  %702 = vmatpush1.bf16.msra.mxu0 %v331
  %703 = vmatprep.subr.bf16.mxu0 0
  %704 = vmatpush1.bf16.msra.mxu0 0
  %705 = vmatprep.subr.bf16.mxu0 0
  %706 = vmatpush1.bf16.msra.mxu0 0
  %707 = vmatprep.subr.bf16.mxu0 0
  %708 = vmatpush1.bf16.msra.mxu0 0
  %709 = vmatprep.subr.bf16.mxu0 0
  %710 = vmatpush1.bf16.msra.mxu0 0
  %711 = vmatprep.subr.bf16.mxu0 0
  %712 = vmatpush1.bf16.msra.mxu0 0
  %713 = vmatprep.subr.bf16.mxu0 0
  %714 = vmatpush1.bf16.msra.mxu0 0
  %715 = vmatprep.subr.bf16.mxu0 0
  %716 = vmatpush1.bf16.msra.mxu0 0
  %717 = vmatprep.subr.bf16.mxu0 0
  %718 = vmatpush1.bf16.msra.mxu0 0
  %719 = vmatprep.subr.bf16.mxu0 0
  %720 = vmatpush1.bf16.msra.mxu0 0
  %721 = vmatprep.subr.bf16.mxu0 0
  %722 = vmatpush1.bf16.msra.mxu0 0
  %723 = vmatprep.subr.bf16.mxu0 0
  %724 = vmatpush1.bf16.msra.mxu0 0
  %725 = vmatprep.subr.bf16.mxu0 0
  %726 = vmatpush1.bf16.msra.mxu0 0
  %727 = vmatprep.subr.bf16.mxu0 0
  %728 = vmatpush1.bf16.msra.mxu0 0
  %729 = vmatprep.subr.bf16.mxu0 0
  %730 = vmatpush1.bf16.msra.mxu0 0
  %731 = vmatprep.mubr.bf16.mxu0 0
  %732 = vmatmul.mubr.bf16.gmra.mrb[0].mxu0 %v634
  %v733 = vpop.f32.mrb[0].mxu0
  %v734 = vadd.f32 %v320, %v733
  %v735 = vpop.f32.mrb[0].mxu0
  %v736 = vpop.f32.mrb[0].mxu0
  %v737 = vpop.f32.mrb[0].mxu0
  %738 = vdwg.mxu0
  %v739 = vpack.c.bf16 %v628, %v628
  %741 = vrot.lane.b32.xlu0 %v739, 64
  %v742 = vpop.permute.xlu0 %741
  %v744 = vsel %vm179, %v742, 0
  %746 = vmatprep.subr.bf16.mxu0 0
  %747 = vmatpush1.bf16.msra.mxu0 %v382
  %748 = vmatprep.subr.bf16.mxu0 0
  %749 = vmatpush1.bf16.msra.mxu0 %v383
  %750 = vmatprep.subr.bf16.mxu0 0
  %751 = vmatpush1.bf16.msra.mxu0 0
  %752 = vmatprep.subr.bf16.mxu0 0
  %753 = vmatpush1.bf16.msra.mxu0 0
  %754 = vmatprep.subr.bf16.mxu0 0
  %755 = vmatpush1.bf16.msra.mxu0 0
  %756 = vmatprep.subr.bf16.mxu0 0
  %757 = vmatpush1.bf16.msra.mxu0 0
  %758 = vmatprep.subr.bf16.mxu0 0
  %759 = vmatpush1.bf16.msra.mxu0 0
  %760 = vmatprep.subr.bf16.mxu0 0
  %761 = vmatpush1.bf16.msra.mxu0 0
  %762 = vmatprep.subr.bf16.mxu0 0
  %763 = vmatpush1.bf16.msra.mxu0 0
  %764 = vmatprep.subr.bf16.mxu0 0
  %765 = vmatpush1.bf16.msra.mxu0 0
  %766 = vmatprep.subr.bf16.mxu0 0
  %767 = vmatpush1.bf16.msra.mxu0 0
  %768 = vmatprep.subr.bf16.mxu0 0
  %769 = vmatpush1.bf16.msra.mxu0 0
  %770 = vmatprep.subr.bf16.mxu0 0
  %771 = vmatpush1.bf16.msra.mxu0 0
  %772 = vmatprep.subr.bf16.mxu0 0
  %773 = vmatpush1.bf16.msra.mxu0 0
  %774 = vmatprep.subr.bf16.mxu0 0
  %775 = vmatpush1.bf16.msra.mxu0 0
  %776 = vmatprep.subr.bf16.mxu0 0
  %777 = vmatpush1.bf16.msra.mxu0 0
  %778 = vmatprep.mubr.bf16.mxu0 0
  %779 = vmatmul.mubr.bf16.gmra.mrb[0].mxu0 %v744
  %v780 = vpop.f32.mrb[0].mxu0
  %v781 = vadd.f32 0.0, %v780
  %v782 = vpop.f32.mrb[0].mxu0
  %v783 = vpop.f32.mrb[0].mxu0
  %v784 = vpop.f32.mrb[0].mxu0
  %785 = vdwg.mxu0
  %v786 = vadd.f32 %v734, %v781
  %v787 = vmul.f32 %v786, 0.5
  %v788 = vtanh.pop %v787
  %v789 = vmul.f32 %v788, 0.5
  %v790 = vadd.f32 %v789, 0.5
  %v791 = vtanh.pop %v786
  %v792 = vmul.f32 %v790, %v622
  %794 = vrot.lane.b32.xlu0 %v791, 32
  %v795 = vpop.permute.xlu0 %794
  %v797 = vmul.f32 %v790, %v795
  %799 = vrot.lane.b32.xlu0 %v797, 32
  %v800 = vpop.permute.xlu0 %799
  %v802 = vadd.f32 %v792, %v800
  %v803 = vtanh.pop %v802
  %805 = vrot.lane.b32.xlu0 %v803, 32
  %v806 = vpop.permute.xlu0 %805
  %v808 = vmul.f32 %v790, %v806
  %v809 = vpack.c.bf16 %v698, %v698
  %811 = vrot.lane.b32.xlu0 %v809, 64
  %v812 = vpop.permute.xlu0 %811
  %v814 = vsel %vm179, %v812, 0
  %816 = vmatprep.subr.bf16.mxu0 0
  %817 = vmatpush1.bf16.msra.mxu0 %v175
  %818 = vmatprep.subr.bf16.mxu0 0
  %819 = vmatpush1.bf16.msra.mxu0 %v176
  %820 = vmatprep.subr.bf16.mxu0 0
  %821 = vmatpush1.bf16.msra.mxu0 0
  %822 = vmatprep.subr.bf16.mxu0 0
  %823 = vmatpush1.bf16.msra.mxu0 0
  %824 = vmatprep.subr.bf16.mxu0 0
  %825 = vmatpush1.bf16.msra.mxu0 0
  %826 = vmatprep.subr.bf16.mxu0 0
  %827 = vmatpush1.bf16.msra.mxu0 0
  %828 = vmatprep.subr.bf16.mxu0 0
  %829 = vmatpush1.bf16.msra.mxu0 0
  %830 = vmatprep.subr.bf16.mxu0 0
  %831 = vmatpush1.bf16.msra.mxu0 0
  %832 = vmatprep.subr.bf16.mxu0 0
  %833 = vmatpush1.bf16.msra.mxu0 0
  %834 = vmatprep.subr.bf16.mxu0 0
  %835 = vmatpush1.bf16.msra.mxu0 0
  %836 = vmatprep.subr.bf16.mxu0 0
  %837 = vmatpush1.bf16.msra.mxu0 0
  %838 = vmatprep.subr.bf16.mxu0 0
  %839 = vmatpush1.bf16.msra.mxu0 0
  %840 = vmatprep.subr.bf16.mxu0 0
  %841 = vmatpush1.bf16.msra.mxu0 0
  %842 = vmatprep.subr.bf16.mxu0 0
  %843 = vmatpush1.bf16.msra.mxu0 0
  %844 = vmatprep.subr.bf16.mxu0 0
  %845 = vmatpush1.bf16.msra.mxu0 0
  %846 = vmatprep.subr.bf16.mxu0 0
  %847 = vmatpush1.bf16.msra.mxu0 0
  %848 = vmatprep.mubr.bf16.mxu0 0
  %849 = vmatmul.mubr.bf16.gmra.mrb[0].mxu0 %v814
  %v850 = vpop.f32.mrb[0].mxu0
  %v851 = vadd.f32 0.0, %v850
  %v852 = vpop.f32.mrb[0].mxu0
  %v853 = vpop.f32.mrb[0].mxu0
  %v854 = vpop.f32.mrb[0].mxu0
  %855 = vdwg.mxu0
  %v856 = vadd.f32 %v153, %v851
  %v857 = vmul.f32 %v856, 0.5
  %v858 = vtanh.pop %v857
  %v859 = vmul.f32 %v858, 0.5
  %v860 = vadd.f32 %v859, 0.5
  %v861 = vtanh.pop %v856
  %v862 = vmul.f32 %v860, %v692
  %864 = vrot.lane.b32.xlu0 %v861, 32
  %v865 = vpop.permute.xlu0 %864
  %v867 = vmul.f32 %v860, %v865
  %869 = vrot.lane.b32.xlu0 %v867, 32
  %v870 = vpop.permute.xlu0 %869
  %v872 = vadd.f32 %v862, %v870
  %v873 = vtanh.pop %v872
  %875 = vrot.lane.b32.xlu0 %v873, 32
  %v876 = vpop.permute.xlu0 %875
  %v878 = vmul.f32 %v860, %v876
  %879 = vmatprep.subr.bf16.mxu0 0
  %880 = vmatpush1.bf16.msra.mxu0 %v330
  %881 = vmatprep.subr.bf16.mxu0 0
  %882 = vmatpush1.bf16.msra.mxu0 %v331
  %883 = vmatprep.subr.bf16.mxu0 0
  %884 = vmatpush1.bf16.msra.mxu0 0
  %885 = vmatprep.subr.bf16.mxu0 0
  %886 = vmatpush1.bf16.msra.mxu0 0
  %887 = vmatprep.subr.bf16.mxu0 0
  %888 = vmatpush1.bf16.msra.mxu0 0
  %889 = vmatprep.subr.bf16.mxu0 0
  %890 = vmatpush1.bf16.msra.mxu0 0
  %891 = vmatprep.subr.bf16.mxu0 0
  %892 = vmatpush1.bf16.msra.mxu0 0
  %893 = vmatprep.subr.bf16.mxu0 0
  %894 = vmatpush1.bf16.msra.mxu0 0
  %895 = vmatprep.subr.bf16.mxu0 0
  %896 = vmatpush1.bf16.msra.mxu0 0
  %897 = vmatprep.subr.bf16.mxu0 0
  %898 = vmatpush1.bf16.msra.mxu0 0
  %899 = vmatprep.subr.bf16.mxu0 0
  %900 = vmatpush1.bf16.msra.mxu0 0
  %901 = vmatprep.subr.bf16.mxu0 0
  %902 = vmatpush1.bf16.msra.mxu0 0
  %903 = vmatprep.subr.bf16.mxu0 0
  %904 = vmatpush1.bf16.msra.mxu0 0
  %905 = vmatprep.subr.bf16.mxu0 0
  %906 = vmatpush1.bf16.msra.mxu0 0
  %907 = vmatprep.subr.bf16.mxu0 0
  %908 = vmatpush1.bf16.msra.mxu0 0
  %909 = vmatprep.subr.bf16.mxu0 0
  %910 = vmatpush1.bf16.msra.mxu0 0
  %911 = vmatprep.mubr.bf16.mxu0 0
  %912 = vmatmul.mubr.bf16.gmra.mrb[0].mxu0 %v814
  %v913 = vpop.f32.mrb[0].mxu0
  %v914 = vadd.f32 %v320, %v913
  %v915 = vpop.f32.mrb[0].mxu0
  %v916 = vpop.f32.mrb[0].mxu0
  %v917 = vpop.f32.mrb[0].mxu0
  %918 = vdwg.mxu0
  %v919 = vpack.c.bf16 %v808, %v808
  %921 = vrot.lane.b32.xlu0 %v919, 64
  %v922 = vpop.permute.xlu0 %921
  %v924 = vsel %vm179, %v922, 0
  %926 = vmatprep.subr.bf16.mxu0 0
  %927 = vmatpush1.bf16.msra.mxu0 %v382
  %928 = vmatprep.subr.bf16.mxu0 0
  %929 = vmatpush1.bf16.msra.mxu0 %v383
  %930 = vmatprep.subr.bf16.mxu0 0
  %931 = vmatpush1.bf16.msra.mxu0 0
  %932 = vmatprep.subr.bf16.mxu0 0
  %933 = vmatpush1.bf16.msra.mxu0 0
  %934 = vmatprep.subr.bf16.mxu0 0
  %935 = vmatpush1.bf16.msra.mxu0 0
  %936 = vmatprep.subr.bf16.mxu0 0
  %937 = vmatpush1.bf16.msra.mxu0 0
  %938 = vmatprep.subr.bf16.mxu0 0
  %939 = vmatpush1.bf16.msra.mxu0 0
  %940 = vmatprep.subr.bf16.mxu0 0
  %941 = vmatpush1.bf16.msra.mxu0 0
  %942 = vmatprep.subr.bf16.mxu0 0
  %943 = vmatpush1.bf16.msra.mxu0 0
  %944 = vmatprep.subr.bf16.mxu0 0
  %945 = vmatpush1.bf16.msra.mxu0 0
  %946 = vmatprep.subr.bf16.mxu0 0
  %947 = vmatpush1.bf16.msra.mxu0 0
  %948 = vmatprep.subr.bf16.mxu0 0
  %949 = vmatpush1.bf16.msra.mxu0 0
  %950 = vmatprep.subr.bf16.mxu0 0
  %951 = vmatpush1.bf16.msra.mxu0 0
  %952 = vmatprep.subr.bf16.mxu0 0
  %953 = vmatpush1.bf16.msra.mxu0 0
  %954 = vmatprep.subr.bf16.mxu0 0
  %955 = vmatpush1.bf16.msra.mxu0 0
  %956 = vmatprep.subr.bf16.mxu0 0
  %957 = vmatpush1.bf16.msra.mxu0 0
  %958 = vmatprep.mubr.bf16.mxu0 0
  %959 = vmatmul.mubr.bf16.gmra.mrb[0].mxu0 %v924
  %v960 = vpop.f32.mrb[0].mxu0
  %v961 = vadd.f32 0.0, %v960
  %v962 = vpop.f32.mrb[0].mxu0
  %v963 = vpop.f32.mrb[0].mxu0
  %v964 = vpop.f32.mrb[0].mxu0
  %965 = vdwg.mxu0
  %v966 = vadd.f32 %v914, %v961
  %v967 = vmul.f32 %v966, 0.5
  %v968 = vtanh.pop %v967
  %v969 = vmul.f32 %v968, 0.5
  %v970 = vadd.f32 %v969, 0.5
  %v971 = vtanh.pop %v966
  %v972 = vmul.f32 %v970, %v802
  %974 = vrot.lane.b32.xlu0 %v971, 32
  %v975 = vpop.permute.xlu0 %974
  %v977 = vmul.f32 %v970, %v975
  %979 = vrot.lane.b32.xlu0 %v977, 32
  %v980 = vpop.permute.xlu0 %979
  %v982 = vadd.f32 %v972, %v980
  %v983 = vtanh.pop %v982
  %985 = vrot.lane.b32.xlu0 %v983, 32
  %v986 = vpop.permute.xlu0 %985
  %v988 = vmul.f32 %v970, %v986
  %v989 = vpack.c.bf16 %v878, %v878
  %991 = vrot.lane.b32.xlu0 %v989, 64
  %v992 = vpop.permute.xlu0 %991
  %v994 = vsel %vm179, %v992, 0
  %996 = vmatprep.subr.bf16.mxu0 0
  %997 = vmatpush1.bf16.msra.mxu0 %v175
  %998 = vmatprep.subr.bf16.mxu0 0
  %999 = vmatpush1.bf16.msra.mxu0 %v176
  %1000 = vmatprep.subr.bf16.mxu0 0
  %1001 = vmatpush1.bf16.msra.mxu0 0
  %1002 = vmatprep.subr.bf16.mxu0 0
  %1003 = vmatpush1.bf16.msra.mxu0 0
  %1004 = vmatprep.subr.bf16.mxu0 0
  %1005 = vmatpush1.bf16.msra.mxu0 0
  %1006 = vmatprep.subr.bf16.mxu0 0
  %1007 = vmatpush1.bf16.msra.mxu0 0
  %1008 = vmatprep.subr.bf16.mxu0 0
  %1009 = vmatpush1.bf16.msra.mxu0 0
  %1010 = vmatprep.subr.bf16.mxu0 0
  %1011 = vmatpush1.bf16.msra.mxu0 0
  %1012 = vmatprep.subr.bf16.mxu0 0
  %1013 = vmatpush1.bf16.msra.mxu0 0
  %1014 = vmatprep.subr.bf16.mxu0 0
  %1015 = vmatpush1.bf16.msra.mxu0 0
  %1016 = vmatprep.subr.bf16.mxu0 0
  %1017 = vmatpush1.bf16.msra.mxu0 0
  %1018 = vmatprep.subr.bf16.mxu0 0
  %1019 = vmatpush1.bf16.msra.mxu0 0
  %1020 = vmatprep.subr.bf16.mxu0 0
  %1021 = vmatpush1.bf16.msra.mxu0 0
  %1022 = vmatprep.subr.bf16.mxu0 0
  %1023 = vmatpush1.bf16.msra.mxu0 0
  %1024 = vmatprep.subr.bf16.mxu0 0
  %1025 = vmatpush1.bf16.msra.mxu0 0
  %1026 = vmatprep.subr.bf16.mxu0 0
  %1027 = vmatpush1.bf16.msra.mxu0 0
  %1028 = vmatprep.mubr.bf16.mxu0 0
  %1029 = vmatmul.mubr.bf16.gmra.mrb[0].mxu0 %v994
  %v1030 = vpop.f32.mrb[0].mxu0
  %v1031 = vadd.f32 0.0, %v1030
  %v1032 = vpop.f32.mrb[0].mxu0
  %v1033 = vpop.f32.mrb[0].mxu0
  %v1034 = vpop.f32.mrb[0].mxu0
  %1035 = vdwg.mxu0
  %v1036 = vadd.f32 %v156, %v1031
  %v1037 = vmul.f32 %v1036, 0.5
  %v1038 = vtanh.pop %v1037
  %v1039 = vmul.f32 %v1038, 0.5
  %v1040 = vadd.f32 %v1039, 0.5
  %v1041 = vtanh.pop %v1036
  %v1042 = vmul.f32 %v1040, %v872
  %1044 = vrot.lane.b32.xlu0 %v1041, 32
  %v1045 = vpop.permute.xlu0 %1044
  %v1047 = vmul.f32 %v1040, %v1045
  %1049 = vrot.lane.b32.xlu0 %v1047, 32
  %v1050 = vpop.permute.xlu0 %1049
  %v1052 = vadd.f32 %v1042, %v1050
  %v1053 = vtanh.pop %v1052
  %1055 = vrot.lane.b32.xlu0 %v1053, 32
  %v1056 = vpop.permute.xlu0 %1055
  %v1058 = vmul.f32 %v1040, %v1056
  %1059 = vmatprep.subr.bf16.mxu0 0
  %1060 = vmatpush1.bf16.msra.mxu0 %v330
  %1061 = vmatprep.subr.bf16.mxu0 0
  %1062 = vmatpush1.bf16.msra.mxu0 %v331
  %1063 = vmatprep.subr.bf16.mxu0 0
  %1064 = vmatpush1.bf16.msra.mxu0 0
  %1065 = vmatprep.subr.bf16.mxu0 0
  %1066 = vmatpush1.bf16.msra.mxu0 0
  %1067 = vmatprep.subr.bf16.mxu0 0
  %1068 = vmatpush1.bf16.msra.mxu0 0
  %1069 = vmatprep.subr.bf16.mxu0 0
  %1070 = vmatpush1.bf16.msra.mxu0 0
  %1071 = vmatprep.subr.bf16.mxu0 0
  %1072 = vmatpush1.bf16.msra.mxu0 0
  %1073 = vmatprep.subr.bf16.mxu0 0
  %1074 = vmatpush1.bf16.msra.mxu0 0
  %1075 = vmatprep.subr.bf16.mxu0 0
  %1076 = vmatpush1.bf16.msra.mxu0 0
  %1077 = vmatprep.subr.bf16.mxu0 0
  %1078 = vmatpush1.bf16.msra.mxu0 0
  %1079 = vmatprep.subr.bf16.mxu0 0
  %1080 = vmatpush1.bf16.msra.mxu0 0
  %1081 = vmatprep.subr.bf16.mxu0 0
  %1082 = vmatpush1.bf16.msra.mxu0 0
  %1083 = vmatprep.subr.bf16.mxu0 0
  %1084 = vmatpush1.bf16.msra.mxu0 0
  %1085 = vmatprep.subr.bf16.mxu0 0
  %1086 = vmatpush1.bf16.msra.mxu0 0
  %1087 = vmatprep.subr.bf16.mxu0 0
  %1088 = vmatpush1.bf16.msra.mxu0 0
  %1089 = vmatprep.subr.bf16.mxu0 0
  %1090 = vmatpush1.bf16.msra.mxu0 0
  %1091 = vmatprep.mubr.bf16.mxu0 0
  %1092 = vmatmul.mubr.bf16.gmra.mrb[0].mxu0 %v994
  %v1093 = vpop.f32.mrb[0].mxu0
  %v1094 = vadd.f32 %v320, %v1093
  %v1095 = vpop.f32.mrb[0].mxu0
  %v1096 = vpop.f32.mrb[0].mxu0
  %v1097 = vpop.f32.mrb[0].mxu0
  %1098 = vdwg.mxu0
  %v1099 = vpack.c.bf16 %v988, %v988
  %1101 = vrot.lane.b32.xlu0 %v1099, 64
  %v1102 = vpop.permute.xlu0 %1101
  %v1104 = vsel %vm179, %v1102, 0
  %1106 = vmatprep.subr.bf16.mxu0 0
  %1107 = vmatpush1.bf16.msra.mxu0 %v382
  %1108 = vmatprep.subr.bf16.mxu0 0
  %1109 = vmatpush1.bf16.msra.mxu0 %v383
  %1110 = vmatprep.subr.bf16.mxu0 0
  %1111 = vmatpush1.bf16.msra.mxu0 0
  %1112 = vmatprep.subr.bf16.mxu0 0
  %1113 = vmatpush1.bf16.msra.mxu0 0
  %1114 = vmatprep.subr.bf16.mxu0 0
  %1115 = vmatpush1.bf16.msra.mxu0 0
  %1116 = vmatprep.subr.bf16.mxu0 0
  %1117 = vmatpush1.bf16.msra.mxu0 0
  %1118 = vmatprep.subr.bf16.mxu0 0
  %1119 = vmatpush1.bf16.msra.mxu0 0
  %1120 = vmatprep.subr.bf16.mxu0 0
  %1121 = vmatpush1.bf16.msra.mxu0 0
  %1122 = vmatprep.subr.bf16.mxu0 0
  %1123 = vmatpush1.bf16.msra.mxu0 0
  %1124 = vmatprep.subr.bf16.mxu0 0
  %1125 = vmatpush1.bf16.msra.mxu0 0
  %1126 = vmatprep.subr.bf16.mxu0 0
  %1127 = vmatpush1.bf16.msra.mxu0 0
  %1128 = vmatprep.subr.bf16.mxu0 0
  %1129 = vmatpush1.bf16.msra.mxu0 0
  %1130 = vmatprep.subr.bf16.mxu0 0
  %1131 = vmatpush1.bf16.msra.mxu0 0
  %1132 = vmatprep.subr.bf16.mxu0 0
  %1133 = vmatpush1.bf16.msra.mxu0 0
  %1134 = vmatprep.subr.bf16.mxu0 0
  %1135 = vmatpush1.bf16.msra.mxu0 0
  %1136 = vmatprep.subr.bf16.mxu0 0
  %1137 = vmatpush1.bf16.msra.mxu0 0
  %1138 = vmatprep.mubr.bf16.mxu0 0
  %1139 = vmatmul.mubr.bf16.gmra.mrb[0].mxu0 %v1104
  %v1140 = vpop.f32.mrb[0].mxu0
  %v1141 = vadd.f32 0.0, %v1140
  %v1142 = vpop.f32.mrb[0].mxu0
  %v1143 = vpop.f32.mrb[0].mxu0
  %v1144 = vpop.f32.mrb[0].mxu0
  %1145 = vdwg.mxu0
  %v1146 = vadd.f32 %v1094, %v1141
  %v1147 = vmul.f32 %v1146, 0.5
  %v1148 = vtanh.pop %v1147
  %v1149 = vmul.f32 %v1148, 0.5
  %v1150 = vadd.f32 %v1149, 0.5
  %v1151 = vtanh.pop %v1146
  %v1152 = vmul.f32 %v1150, %v982
  %1154 = vrot.lane.b32.xlu0 %v1151, 32
  %v1155 = vpop.permute.xlu0 %1154
  %v1157 = vmul.f32 %v1150, %v1155
  %1159 = vrot.lane.b32.xlu0 %v1157, 32
  %v1160 = vpop.permute.xlu0 %1159
  %v1162 = vadd.f32 %v1152, %v1160
  %v1163 = vtanh.pop %v1162
  %1165 = vrot.lane.b32.xlu0 %v1163, 32
  %v1166 = vpop.permute.xlu0 %1165
  %v1168 = vmul.f32 %v1150, %v1166
  %v1169 = vpack.c.bf16 %v1058, %v1058
  %1171 = vrot.lane.b32.xlu0 %v1169, 64
  %v1172 = vpop.permute.xlu0 %1171
  %v1174 = vsel %vm179, %v1172, 0
  %1176 = vmatprep.subr.bf16.mxu0 0
  %1177 = vmatpush1.bf16.msra.mxu0 %v175
  %1178 = vmatprep.subr.bf16.mxu0 0
  %1179 = vmatpush1.bf16.msra.mxu0 %v176
  %1180 = vmatprep.subr.bf16.mxu0 0
  %1181 = vmatpush1.bf16.msra.mxu0 0
  %1182 = vmatprep.subr.bf16.mxu0 0
  %1183 = vmatpush1.bf16.msra.mxu0 0
  %1184 = vmatprep.subr.bf16.mxu0 0
  %1185 = vmatpush1.bf16.msra.mxu0 0
  %1186 = vmatprep.subr.bf16.mxu0 0
  %1187 = vmatpush1.bf16.msra.mxu0 0
  %1188 = vmatprep.subr.bf16.mxu0 0
  %1189 = vmatpush1.bf16.msra.mxu0 0
  %1190 = vmatprep.subr.bf16.mxu0 0
  %1191 = vmatpush1.bf16.msra.mxu0 0
  %1192 = vmatprep.subr.bf16.mxu0 0
  %1193 = vmatpush1.bf16.msra.mxu0 0
  %1194 = vmatprep.subr.bf16.mxu0 0
  %1195 = vmatpush1.bf16.msra.mxu0 0
  %1196 = vmatprep.subr.bf16.mxu0 0
  %1197 = vmatpush1.bf16.msra.mxu0 0
  %1198 = vmatprep.subr.bf16.mxu0 0
  %1199 = vmatpush1.bf16.msra.mxu0 0
  %1200 = vmatprep.subr.bf16.mxu0 0
  %1201 = vmatpush1.bf16.msra.mxu0 0
  %1202 = vmatprep.subr.bf16.mxu0 0
  %1203 = vmatpush1.bf16.msra.mxu0 0
  %1204 = vmatprep.subr.bf16.mxu0 0
  %1205 = vmatpush1.bf16.msra.mxu0 0
  %1206 = vmatprep.subr.bf16.mxu0 0
  %1207 = vmatpush1.bf16.msra.mxu0 0
  %1208 = vmatprep.mubr.bf16.mxu0 0
  %1209 = vmatmul.mubr.bf16.gmra.mrb[0].mxu0 %v1174
  %v1210 = vpop.f32.mrb[0].mxu0
  %v1211 = vadd.f32 0.0, %v1210
  %v1212 = vpop.f32.mrb[0].mxu0
  %v1213 = vpop.f32.mrb[0].mxu0
  %v1214 = vpop.f32.mrb[0].mxu0
  %1215 = vdwg.mxu0
  %v1216 = vadd.f32 %v161, %v1211
  %v1217 = vmul.f32 %v1216, 0.5
  %v1218 = vtanh.pop %v1217
  %v1219 = vmul.f32 %v1218, 0.5
  %v1220 = vadd.f32 %v1219, 0.5
  %v1221 = vtanh.pop %v1216
  %v1222 = vmul.f32 %v1220, %v1052
  %1224 = vrot.lane.b32.xlu0 %v1221, 32
  %v1225 = vpop.permute.xlu0 %1224
  %v1227 = vmul.f32 %v1220, %v1225
  %1229 = vrot.lane.b32.xlu0 %v1227, 32
  %v1230 = vpop.permute.xlu0 %1229
  %v1232 = vadd.f32 %v1222, %v1230
  %v1233 = vtanh.pop %v1232
  %1235 = vrot.lane.b32.xlu0 %v1233, 32
  %v1236 = vpop.permute.xlu0 %1235
  %v1238 = vmul.f32 %v1220, %v1236
  %1239 = vmatprep.subr.bf16.mxu0 0
  %1240 = vmatpush1.bf16.msra.mxu0 %v330
  %1241 = vmatprep.subr.bf16.mxu0 0
  %1242 = vmatpush1.bf16.msra.mxu0 %v331
  %1243 = vmatprep.subr.bf16.mxu0 0
  %1244 = vmatpush1.bf16.msra.mxu0 0
  %1245 = vmatprep.subr.bf16.mxu0 0
  %1246 = vmatpush1.bf16.msra.mxu0 0
  %1247 = vmatprep.subr.bf16.mxu0 0
  %1248 = vmatpush1.bf16.msra.mxu0 0
  %1249 = vmatprep.subr.bf16.mxu0 0
  %1250 = vmatpush1.bf16.msra.mxu0 0
  %1251 = vmatprep.subr.bf16.mxu0 0
  %1252 = vmatpush1.bf16.msra.mxu0 0
  %1253 = vmatprep.subr.bf16.mxu0 0
  %1254 = vmatpush1.bf16.msra.mxu0 0
  %1255 = vmatprep.subr.bf16.mxu0 0
  %1256 = vmatpush1.bf16.msra.mxu0 0
  %1257 = vmatprep.subr.bf16.mxu0 0
  %1258 = vmatpush1.bf16.msra.mxu0 0
  %1259 = vmatprep.subr.bf16.mxu0 0
  %1260 = vmatpush1.bf16.msra.mxu0 0
  %1261 = vmatprep.subr.bf16.mxu0 0
  %1262 = vmatpush1.bf16.msra.mxu0 0
  %1263 = vmatprep.subr.bf16.mxu0 0
  %1264 = vmatpush1.bf16.msra.mxu0 0
  %1265 = vmatprep.subr.bf16.mxu0 0
  %1266 = vmatpush1.bf16.msra.mxu0 0
  %1267 = vmatprep.subr.bf16.mxu0 0
  %1268 = vmatpush1.bf16.msra.mxu0 0
  %1269 = vmatprep.subr.bf16.mxu0 0
  %1270 = vmatpush1.bf16.msra.mxu0 0
  %1271 = vmatprep.mubr.bf16.mxu0 0
  %1272 = vmatmul.mubr.bf16.gmra.mrb[0].mxu0 %v1174
  %v1273 = vpop.f32.mrb[0].mxu0
  %v1274 = vadd.f32 %v320, %v1273
  %v1275 = vpop.f32.mrb[0].mxu0
  %v1276 = vpop.f32.mrb[0].mxu0
  %v1277 = vpop.f32.mrb[0].mxu0
  %1278 = vdwg.mxu0
  %v1279 = vpack.c.bf16 %v1168, %v1168
  %1281 = vrot.lane.b32.xlu0 %v1279, 64
  %v1282 = vpop.permute.xlu0 %1281
  %v1284 = vsel %vm179, %v1282, 0
  %1286 = vmatprep.subr.bf16.mxu0 0
  %1287 = vmatpush1.bf16.msra.mxu0 %v382
  %1288 = vmatprep.subr.bf16.mxu0 0
  %1289 = vmatpush1.bf16.msra.mxu0 %v383
  %1290 = vmatprep.subr.bf16.mxu0 0
  %1291 = vmatpush1.bf16.msra.mxu0 0
  %1292 = vmatprep.subr.bf16.mxu0 0
  %1293 = vmatpush1.bf16.msra.mxu0 0
  %1294 = vmatprep.subr.bf16.mxu0 0
  %1295 = vmatpush1.bf16.msra.mxu0 0
  %1296 = vmatprep.subr.bf16.mxu0 0
  %1297 = vmatpush1.bf16.msra.mxu0 0
  %1298 = vmatprep.subr.bf16.mxu0 0
  %1299 = vmatpush1.bf16.msra.mxu0 0
  %1300 = vmatprep.subr.bf16.mxu0 0
  %1301 = vmatpush1.bf16.msra.mxu0 0
  %1302 = vmatprep.subr.bf16.mxu0 0
  %1303 = vmatpush1.bf16.msra.mxu0 0
  %1304 = vmatprep.subr.bf16.mxu0 0
  %1305 = vmatpush1.bf16.msra.mxu0 0
  %1306 = vmatprep.subr.bf16.mxu0 0
  %1307 = vmatpush1.bf16.msra.mxu0 0
  %1308 = vmatprep.subr.bf16.mxu0 0
  %1309 = vmatpush1.bf16.msra.mxu0 0
  %1310 = vmatprep.subr.bf16.mxu0 0
  %1311 = vmatpush1.bf16.msra.mxu0 0
  %1312 = vmatprep.subr.bf16.mxu0 0
  %1313 = vmatpush1.bf16.msra.mxu0 0
  %1314 = vmatprep.subr.bf16.mxu0 0
  %1315 = vmatpush1.bf16.msra.mxu0 0
  %1316 = vmatprep.subr.bf16.mxu0 0
  %1317 = vmatpush1.bf16.msra.mxu0 0
  %1318 = vmatprep.mubr.bf16.mxu0 0
  %1319 = vmatmul.mubr.bf16.gmra.mrb[0].mxu0 %v1284
  %v1320 = vpop.f32.mrb[0].mxu0
  %v1321 = vadd.f32 0.0, %v1320
  %v1322 = vpop.f32.mrb[0].mxu0
  %v1323 = vpop.f32.mrb[0].mxu0
  %v1324 = vpop.f32.mrb[0].mxu0
  %1325 = vdwg.mxu0
  %v1326 = vadd.f32 %v1274, %v1321
  %v1327 = vmul.f32 %v1326, 0.5
  %v1328 = vtanh.pop %v1327
  %v1329 = vmul.f32 %v1328, 0.5
  %v1330 = vadd.f32 %v1329, 0.5
  %v1331 = vtanh.pop %v1326
  %v1332 = vmul.f32 %v1330, %v1162
  %1334 = vrot.lane.b32.xlu0 %v1331, 32
  %v1335 = vpop.permute.xlu0 %1334
  %v1337 = vmul.f32 %v1330, %v1335
  %1339 = vrot.lane.b32.xlu0 %v1337, 32
  %v1340 = vpop.permute.xlu0 %1339
  %v1342 = vadd.f32 %v1332, %v1340
  %v1343 = vtanh.pop %v1342
  %1345 = vrot.lane.b32.xlu0 %v1343, 32
  %v1346 = vpop.permute.xlu0 %1345
  %v1348 = vmul.f32 %v1330, %v1346
  %v1349 = vpack.c.bf16 %v1238, %v1238
  %1351 = vrot.lane.b32.xlu0 %v1349, 64
  %v1352 = vpop.permute.xlu0 %1351
  %v1354 = vsel %vm179, %v1352, 0
  %1356 = vmatprep.subr.bf16.mxu0 0
  %1357 = vmatpush1.bf16.msra.mxu0 %v175
  %1358 = vmatprep.subr.bf16.mxu0 0
  %1359 = vmatpush1.bf16.msra.mxu0 %v176
  %1360 = vmatprep.subr.bf16.mxu0 0
  %1361 = vmatpush1.bf16.msra.mxu0 0
  %1362 = vmatprep.subr.bf16.mxu0 0
  %1363 = vmatpush1.bf16.msra.mxu0 0
  %1364 = vmatprep.subr.bf16.mxu0 0
  %1365 = vmatpush1.bf16.msra.mxu0 0
  %1366 = vmatprep.subr.bf16.mxu0 0
  %1367 = vmatpush1.bf16.msra.mxu0 0
  %1368 = vmatprep.subr.bf16.mxu0 0
  %1369 = vmatpush1.bf16.msra.mxu0 0
  %1370 = vmatprep.subr.bf16.mxu0 0
  %1371 = vmatpush1.bf16.msra.mxu0 0
  %1372 = vmatprep.subr.bf16.mxu0 0
  %1373 = vmatpush1.bf16.msra.mxu0 0
  %1374 = vmatprep.subr.bf16.mxu0 0
  %1375 = vmatpush1.bf16.msra.mxu0 0
  %1376 = vmatprep.subr.bf16.mxu0 0
  %1377 = vmatpush1.bf16.msra.mxu0 0
  %1378 = vmatprep.subr.bf16.mxu0 0
  %1379 = vmatpush1.bf16.msra.mxu0 0
  %1380 = vmatprep.subr.bf16.mxu0 0
  %1381 = vmatpush1.bf16.msra.mxu0 0
  %1382 = vmatprep.subr.bf16.mxu0 0
  %1383 = vmatpush1.bf16.msra.mxu0 0
  %1384 = vmatprep.subr.bf16.mxu0 0
  %1385 = vmatpush1.bf16.msra.mxu0 0
  %1386 = vmatprep.subr.bf16.mxu0 0
  %1387 = vmatpush1.bf16.msra.mxu0 0
  %1388 = vmatprep.mubr.bf16.mxu0 0
  %1389 = vmatmul.mubr.bf16.gmra.mrb[0].mxu0 %v1354
  %v1390 = vpop.f32.mrb[0].mxu0
  %v1391 = vadd.f32 0.0, %v1390
  %v1392 = vpop.f32.mrb[0].mxu0
  %v1393 = vpop.f32.mrb[0].mxu0
  %v1394 = vpop.f32.mrb[0].mxu0
  %1395 = vdwg.mxu0
  %v1396 = vadd.f32 %v164, %v1391
  %v1397 = vmul.f32 %v1396, 0.5
  %v1398 = vtanh.pop %v1397
  %v1399 = vmul.f32 %v1398, 0.5
  %v1400 = vadd.f32 %v1399, 0.5
  %v1401 = vtanh.pop %v1396
  %v1402 = vmul.f32 %v1400, %v1232
  %1404 = vrot.lane.b32.xlu0 %v1401, 32
  %v1405 = vpop.permute.xlu0 %1404
  %v1407 = vmul.f32 %v1400, %v1405
  %1409 = vrot.lane.b32.xlu0 %v1407, 32
  %v1410 = vpop.permute.xlu0 %1409
  %v1412 = vadd.f32 %v1402, %v1410
  %v1413 = vtanh.pop %v1412
  %1415 = vrot.lane.b32.xlu0 %v1413, 32
  %v1416 = vpop.permute.xlu0 %1415
  %v1418 = vmul.f32 %v1400, %v1416
  %1419 = vmatprep.subr.bf16.mxu0 0
  %1420 = vmatpush1.bf16.msra.mxu0 %v330
  %1421 = vmatprep.subr.bf16.mxu0 0
  %1422 = vmatpush1.bf16.msra.mxu0 %v331
  %1423 = vmatprep.subr.bf16.mxu0 0
  %1424 = vmatpush1.bf16.msra.mxu0 0
  %1425 = vmatprep.subr.bf16.mxu0 0
  %1426 = vmatpush1.bf16.msra.mxu0 0
  %1427 = vmatprep.subr.bf16.mxu0 0
  %1428 = vmatpush1.bf16.msra.mxu0 0
  %1429 = vmatprep.subr.bf16.mxu0 0
  %1430 = vmatpush1.bf16.msra.mxu0 0
  %1431 = vmatprep.subr.bf16.mxu0 0
  %1432 = vmatpush1.bf16.msra.mxu0 0
  %1433 = vmatprep.subr.bf16.mxu0 0
  %1434 = vmatpush1.bf16.msra.mxu0 0
  %1435 = vmatprep.subr.bf16.mxu0 0
  %1436 = vmatpush1.bf16.msra.mxu0 0
  %1437 = vmatprep.subr.bf16.mxu0 0
  %1438 = vmatpush1.bf16.msra.mxu0 0
  %1439 = vmatprep.subr.bf16.mxu0 0
  %1440 = vmatpush1.bf16.msra.mxu0 0
  %1441 = vmatprep.subr.bf16.mxu0 0
  %1442 = vmatpush1.bf16.msra.mxu0 0
  %1443 = vmatprep.subr.bf16.mxu0 0
  %1444 = vmatpush1.bf16.msra.mxu0 0
  %1445 = vmatprep.subr.bf16.mxu0 0
  %1446 = vmatpush1.bf16.msra.mxu0 0
  %1447 = vmatprep.subr.bf16.mxu0 0
  %1448 = vmatpush1.bf16.msra.mxu0 0
  %1449 = vmatprep.subr.bf16.mxu0 0
  %1450 = vmatpush1.bf16.msra.mxu0 0
  %1451 = vmatprep.mubr.bf16.mxu0 0
  %1452 = vmatmul.mubr.bf16.gmra.mrb[0].mxu0 %v1354
  %v1453 = vpop.f32.mrb[0].mxu0
  %v1454 = vadd.f32 %v320, %v1453
  %v1455 = vpop.f32.mrb[0].mxu0
  %v1456 = vpop.f32.mrb[0].mxu0
  %v1457 = vpop.f32.mrb[0].mxu0
  %1458 = vdwg.mxu0
  %v1459 = vpack.c.bf16 %v1348, %v1348
  %1461 = vrot.lane.b32.xlu0 %v1459, 64
  %v1462 = vpop.permute.xlu0 %1461
  %v1464 = vsel %vm179, %v1462, 0
  %1466 = vmatprep.subr.bf16.mxu0 0
  %1467 = vmatpush1.bf16.msra.mxu0 %v382
  %1468 = vmatprep.subr.bf16.mxu0 0
  %1469 = vmatpush1.bf16.msra.mxu0 %v383
  %1470 = vmatprep.subr.bf16.mxu0 0
  %1471 = vmatpush1.bf16.msra.mxu0 0
  %1472 = vmatprep.subr.bf16.mxu0 0
  %1473 = vmatpush1.bf16.msra.mxu0 0
  %1474 = vmatprep.subr.bf16.mxu0 0
  %1475 = vmatpush1.bf16.msra.mxu0 0
  %1476 = vmatprep.subr.bf16.mxu0 0
  %1477 = vmatpush1.bf16.msra.mxu0 0
  %1478 = vmatprep.subr.bf16.mxu0 0
  %1479 = vmatpush1.bf16.msra.mxu0 0
  %1480 = vmatprep.subr.bf16.mxu0 0
  %1481 = vmatpush1.bf16.msra.mxu0 0
  %1482 = vmatprep.subr.bf16.mxu0 0
  %1483 = vmatpush1.bf16.msra.mxu0 0
  %1484 = vmatprep.subr.bf16.mxu0 0
  %1485 = vmatpush1.bf16.msra.mxu0 0
  %1486 = vmatprep.subr.bf16.mxu0 0
  %1487 = vmatpush1.bf16.msra.mxu0 0
  %1488 = vmatprep.subr.bf16.mxu0 0
  %1489 = vmatpush1.bf16.msra.mxu0 0
  %1490 = vmatprep.subr.bf16.mxu0 0
  %1491 = vmatpush1.bf16.msra.mxu0 0
  %1492 = vmatprep.subr.bf16.mxu0 0
  %1493 = vmatpush1.bf16.msra.mxu0 0
  %1494 = vmatprep.subr.bf16.mxu0 0
  %1495 = vmatpush1.bf16.msra.mxu0 0
  %1496 = vmatprep.subr.bf16.mxu0 0
  %1497 = vmatpush1.bf16.msra.mxu0 0
  %1498 = vmatprep.mubr.bf16.mxu0 0
  %1499 = vmatmul.mubr.bf16.gmra.mrb[0].mxu0 %v1464
  %v1500 = vpop.f32.mrb[0].mxu0
  %v1501 = vadd.f32 0.0, %v1500
  %v1502 = vpop.f32.mrb[0].mxu0
  %v1503 = vpop.f32.mrb[0].mxu0
  %v1504 = vpop.f32.mrb[0].mxu0
  %1505 = vdwg.mxu0
  %v1506 = vadd.f32 %v1454, %v1501
  %v1507 = vmul.f32 %v1506, 0.5
  %v1508 = vtanh.pop %v1507
  %v1509 = vmul.f32 %v1508, 0.5
  %v1510 = vadd.f32 %v1509, 0.5
  %v1511 = vtanh.pop %v1506
  %v1512 = vmul.f32 %v1510, %v1342
  %1514 = vrot.lane.b32.xlu0 %v1511, 32
  %v1515 = vpop.permute.xlu0 %1514
  %v1517 = vmul.f32 %v1510, %v1515
  %1519 = vrot.lane.b32.xlu0 %v1517, 32
  %v1520 = vpop.permute.xlu0 %1519
  %v1522 = vadd.f32 %v1512, %v1520
  %v1523 = vtanh.pop %v1522
  %1525 = vrot.lane.b32.xlu0 %v1523, 32
  %v1526 = vpop.permute.xlu0 %1525
  %v1528 = vmul.f32 %v1510, %v1526
  %v1529 = vpack.c.bf16 %v1418, %v1418
  %1531 = vrot.lane.b32.xlu0 %v1529, 64
  %v1532 = vpop.permute.xlu0 %1531
  %v1534 = vsel %vm179, %v1532, 0
  %1536 = vmatprep.subr.bf16.mxu0 0
  %1537 = vmatpush1.bf16.msra.mxu0 %v330
  %1538 = vmatprep.subr.bf16.mxu0 0
  %1539 = vmatpush1.bf16.msra.mxu0 %v331
  %1540 = vmatprep.subr.bf16.mxu0 0
  %1541 = vmatpush1.bf16.msra.mxu0 0
  %1542 = vmatprep.subr.bf16.mxu0 0
  %1543 = vmatpush1.bf16.msra.mxu0 0
  %1544 = vmatprep.subr.bf16.mxu0 0
  %1545 = vmatpush1.bf16.msra.mxu0 0
  %1546 = vmatprep.subr.bf16.mxu0 0
  %1547 = vmatpush1.bf16.msra.mxu0 0
  %1548 = vmatprep.subr.bf16.mxu0 0
  %1549 = vmatpush1.bf16.msra.mxu0 0
  %1550 = vmatprep.subr.bf16.mxu0 0
  %1551 = vmatpush1.bf16.msra.mxu0 0
  %1552 = vmatprep.subr.bf16.mxu0 0
  %1553 = vmatpush1.bf16.msra.mxu0 0
  %1554 = vmatprep.subr.bf16.mxu0 0
  %1555 = vmatpush1.bf16.msra.mxu0 0
  %1556 = vmatprep.subr.bf16.mxu0 0
  %1557 = vmatpush1.bf16.msra.mxu0 0
  %1558 = vmatprep.subr.bf16.mxu0 0
  %1559 = vmatpush1.bf16.msra.mxu0 0
  %1560 = vmatprep.subr.bf16.mxu0 0
  %1561 = vmatpush1.bf16.msra.mxu0 0
  %1562 = vmatprep.subr.bf16.mxu0 0
  %1563 = vmatpush1.bf16.msra.mxu0 0
  %1564 = vmatprep.subr.bf16.mxu0 0
  %1565 = vmatpush1.bf16.msra.mxu0 0
  %1566 = vmatprep.subr.bf16.mxu0 0
  %1567 = vmatpush1.bf16.msra.mxu0 0
  %1568 = vmatprep.mubr.bf16.mxu0 0
  %1569 = vmatmul.mubr.bf16.gmra.mrb[0].mxu0 %v1534
  %v1570 = vpop.f32.mrb[0].mxu0
  %v1571 = vadd.f32 %v320, %v1570
  %v1572 = vpop.f32.mrb[0].mxu0
  %v1573 = vpop.f32.mrb[0].mxu0
  %v1574 = vpop.f32.mrb[0].mxu0
  %1575 = vdwg.mxu0
  %v1576 = vpack.c.bf16 %v1528, %v1528
  %1578 = vrot.lane.b32.xlu0 %v1576, 64
  %v1579 = vpop.permute.xlu0 %1578
  %v1581 = vsel %vm179, %v1579, 0
  %1583 = vmatprep.subr.bf16.mxu0 0
  %1584 = vmatpush1.bf16.msra.mxu0 %v382
  %1585 = vmatprep.subr.bf16.mxu0 0
  %1586 = vmatpush1.bf16.msra.mxu0 %v383
  %1587 = vmatprep.subr.bf16.mxu0 0
  %1588 = vmatpush1.bf16.msra.mxu0 0
  %1589 = vmatprep.subr.bf16.mxu0 0
  %1590 = vmatpush1.bf16.msra.mxu0 0
  %1591 = vmatprep.subr.bf16.mxu0 0
  %1592 = vmatpush1.bf16.msra.mxu0 0
  %1593 = vmatprep.subr.bf16.mxu0 0
  %1594 = vmatpush1.bf16.msra.mxu0 0
  %1595 = vmatprep.subr.bf16.mxu0 0
  %1596 = vmatpush1.bf16.msra.mxu0 0
  %1597 = vmatprep.subr.bf16.mxu0 0
  %1598 = vmatpush1.bf16.msra.mxu0 0
  %1599 = vmatprep.subr.bf16.mxu0 0
  %1600 = vmatpush1.bf16.msra.mxu0 0
  %1601 = vmatprep.subr.bf16.mxu0 0
  %1602 = vmatpush1.bf16.msra.mxu0 0
  %1603 = vmatprep.subr.bf16.mxu0 0
  %1604 = vmatpush1.bf16.msra.mxu0 0
  %1605 = vmatprep.subr.bf16.mxu0 0
  %1606 = vmatpush1.bf16.msra.mxu0 0
  %1607 = vmatprep.subr.bf16.mxu0 0
  %1608 = vmatpush1.bf16.msra.mxu0 0
  %1609 = vmatprep.subr.bf16.mxu0 0
  %1610 = vmatpush1.bf16.msra.mxu0 0
  %1611 = vmatprep.subr.bf16.mxu0 0
  %1612 = vmatpush1.bf16.msra.mxu0 0
  %1613 = vmatprep.subr.bf16.mxu0 0
  %1614 = vmatpush1.bf16.msra.mxu0 0
  %1615 = vmatprep.mubr.bf16.mxu0 0
  %1616 = vmatmul.mubr.bf16.gmra.mrb[0].mxu0 %v1581
  %v1617 = vpop.f32.mrb[0].mxu0
  %v1618 = vadd.f32 0.0, %v1617
  %v1619 = vpop.f32.mrb[0].mxu0
  %v1620 = vpop.f32.mrb[0].mxu0
  %v1621 = vpop.f32.mrb[0].mxu0
  %1622 = vdwg.mxu0
  %v1623 = vadd.f32 %v1571, %v1618
  %v1624 = vmul.f32 %v1623, 0.5
  %v1625 = vtanh.pop %v1624
  %v1626 = vmul.f32 %v1625, 0.5
  %v1627 = vadd.f32 %v1626, 0.5
  %v1628 = vtanh.pop %v1623
  %v1629 = vmul.f32 %v1627, %v1522
  %1631 = vrot.lane.b32.xlu0 %v1628, 32
  %v1632 = vpop.permute.xlu0 %1631
  %v1634 = vmul.f32 %v1627, %v1632
  %1636 = vrot.lane.b32.xlu0 %v1634, 32
  %v1637 = vpop.permute.xlu0 %1636
  %v1639 = vadd.f32 %v1629, %v1637
  %v1640 = vtanh.pop %v1639
  %1642 = vrot.lane.b32.xlu0 %v1640, 32
  %v1643 = vpop.permute.xlu0 %1642
  %v1645 = vmul.f32 %v1627, %v1643
  %v1646 = vpack.c.bf16 %v1645, %v1645
  %v1647 = vld [vmem:[%s7] sm:$0xf]
  %v1648 = vld [vmem:[%s7 + $0x4] sm:$0xf]
  %v1649 = vld [vmem:[%s7 + $0x8] sm:$0xf]
  %v1650 = vld [vmem:[%s7 + $0xc] sm:$0xf]
  %v1651 = vld [vmem:[%s8] sm:$0x1]
  %v1653 = vlaneseq
  %v1654 = vshrl.u32 %v1653, 7
  %v1655 = vsub.s32 0, %v1654
  %v1656 = vrot.slane %v1651, %v1655
  %1659 = vrot.lane.b32.xlu0 %v1646, 64
  %v1660 = vpop.permute.xlu0 %1659
  %v1665 = vunpack.c.l.b16 %v1647
  %v1666 = vunpack.c.l.b16 %v1648
  %v1667 = vunpack.c.l.b16 %v1649
  %v1668 = vunpack.c.l.b16 %v1650
  %v1669 = vpack.c.b16 %v1666, %v1665
  %v1670 = vpack.c.b16 %v1668, %v1667
  %v1674 = vsel %vm179, %v1660, 0
  %1676 = vmatprep.subr.bf16.mxu0 0
  %1677 = vmatpush1.bf16.msra.mxu0 %v1669
  %1678 = vmatprep.subr.bf16.mxu0 0
  %1679 = vmatpush1.bf16.msra.mxu0 %v1670
  %1680 = vmatprep.subr.bf16.mxu0 0
  %1681 = vmatpush1.bf16.msra.mxu0 0
  %1682 = vmatprep.subr.bf16.mxu0 0
  %1683 = vmatpush1.bf16.msra.mxu0 0
  %1684 = vmatprep.subr.bf16.mxu0 0
  %1685 = vmatpush1.bf16.msra.mxu0 0
  %1686 = vmatprep.subr.bf16.mxu0 0
  %1687 = vmatpush1.bf16.msra.mxu0 0
  %1688 = vmatprep.subr.bf16.mxu0 0
  %1689 = vmatpush1.bf16.msra.mxu0 0
  %1690 = vmatprep.subr.bf16.mxu0 0
  %1691 = vmatpush1.bf16.msra.mxu0 0
  %1692 = vmatprep.subr.bf16.mxu0 0
  %1693 = vmatpush1.bf16.msra.mxu0 0
  %1694 = vmatprep.subr.bf16.mxu0 0
  %1695 = vmatpush1.bf16.msra.mxu0 0
  %1696 = vmatprep.subr.bf16.mxu0 0
  %1697 = vmatpush1.bf16.msra.mxu0 0
  %1698 = vmatprep.subr.bf16.mxu0 0
  %1699 = vmatpush1.bf16.msra.mxu0 0
  %1700 = vmatprep.subr.bf16.mxu0 0
  %1701 = vmatpush1.bf16.msra.mxu0 0
  %1702 = vmatprep.subr.bf16.mxu0 0
  %1703 = vmatpush1.bf16.msra.mxu0 0
  %1704 = vmatprep.subr.bf16.mxu0 0
  %1705 = vmatpush1.bf16.msra.mxu0 0
  %1706 = vmatprep.subr.bf16.mxu0 0
  %1707 = vmatpush1.bf16.msra.mxu0 0
  %1708 = vmatprep.mubr.bf16.mxu0 0
  %1709 = vmatmul.mubr.bf16.gmra.mrb[0].mxu0 %v1674
  %v1710 = vpop.f32.mrb[0].mxu0
  %v1711 = vadd.f32 %v1656, %v1710
  %v1712 = vpop.f32.mrb[0].mxu0
  %v1713 = vpop.f32.mrb[0].mxu0
  %v1714 = vpop.f32.mrb[0].mxu0
  %1715 = vdwg.mxu0
  %1716 = vmax.xlane.f32.xlu0 %v1711
  %v1717 = vpop.xlane.xlu0 %1716
  %v1718 = vsub.f32 %v1711, %v1717
  %v1719 = vmul.f32 %v1718, 1.442695
  %v1720 = vpow.pop %v1719
  %1721 = vadd.xlane.f32.xlu0 %v1720
  %v1722 = vpop.xlane.xlu0 %1721
  %v1723 = vlog2.pop %v1722
  %v1724 = vmul.f32 %v1723, 0.6931472
  %v1725 = vsub.f32 %v1718, %v1724
  %1726 = vst [vmem:[%s9] sm:$0xff] %v1725
  // Predicated region
  $region38: #{rnn_forward.1} parent=0 // pred_check
    _
  $region39: #{rnn_forward.1} parent=0 // pred_check_branch
    %1728 = sbr.rel (0) target = $region41
  $region40: #{rnn_forward.1} parent=0 // pred_region
    _
  $region41: #{rnn_forward.1} parent=0 // pred_fallthru
    _
  // Predicated region
  $region42: #{rnn_forward.1} parent=0 // pred_check
    _
  $region43: #{rnn_forward.1} parent=0 // pred_check_branch
    %1730 = sbr.rel (0) target = $region45
  $region44: #{rnn_forward.1} parent=0 // pred_region
    _
  $region45: #{rnn_forward.1} parent=0 // pred_fallthru
    _

</llo_original>
